<compile_context>
chip_gen: v7x
topology: tpu7x:2x2x1
jax: 0.10.0
libtpu: 0.0.40
codegen_flags: <defaults>
</compile_context>

<pallas_src>
import functools

import jax
import jax.numpy as jnp
from jax.experimental import pallas as pl
from jax.experimental.pallas import tpu as pltpu


# ----------------------------------------------------------------------------
# Fused kernel: depthwise kxk conv (+folded BN) + 1x1 conv, one batch per grid step
# ----------------------------------------------------------------------------
def _dw_bn_pw_kernel(x_ref, wdw_ref, wpw_ref, bpw_ref, o_ref, *,
                     k, stride, dilation, Ho, Wo):
    """x_ref:   (s*s, Hq, Wq, Cin)  phase-decomposed zero-padded input (VMEM)
       wdw_ref: (k*k, Cin)          depthwise weights, (ky, kx) major order
       wpw_ref: (Cin, Cout)         1x1 weights with BN scale folded in (f32 or bf16)
       bpw_ref: (1, Cout)           1x1 bias with BN shift + depthwise bias folded in
       o_ref:   (Ho*Wo, Cout)       output rows for this batch element
    """
    cin = wdw_ref.shape[-1]

    # Depthwise conv as k*k shifted VPU multiply-accumulates (f32, in VMEM/vregs).
    acc = None
    for ky in range(k):
        for kx in range(k):
            h0 = ky * dilation
            w0 = kx * dilation
            qh, rh = h0 % stride, h0 // stride      # phase / block offset along H
            qw, rw = w0 % stride, w0 // stride      # phase / block offset along W
            tap = x_ref[pl.ds(qh * stride + qw, 1),
                        pl.ds(rh, Ho),
                        pl.ds(rw, Wo), :]           # (1, Ho, Wo, Cin), contiguous slice
            w_t = wdw_ref[pl.ds(ky * k + kx, 1), :]  # (1, Cin)
            term = tap * w_t
            acc = term if acc is None else acc + term

    # 1x1 conv on the MXU: (Ho*Wo, Cin) @ (Cin, Cout).  BN scale is pre-folded into
    # wpw_ref; depthwise bias + BN shift are pre-folded into bpw_ref.
    lhs = acc.reshape(Ho * Wo, cin).astype(wpw_ref.dtype)
    out = jnp.dot(lhs, wpw_ref[...], preferred_element_type=jnp.float32)
    o_ref[...] = (out + bpw_ref[...]).astype(o_ref.dtype)


# ----------------------------------------------------------------------------
# Wrapper (plain-JAX glue: layout, padding, phase decomposition, BN folding)
# ----------------------------------------------------------------------------
def _phase_decompose(x_nhwc, pad, stride):
    """Zero-pad and space-to-depth decompose so strided taps become contiguous slices.

    Returns (B, stride*stride, Hq, Wq, C) with
      out[b, qh*stride + qw, i, j, c] == x_padded[b, i*stride + qh, j*stride + qw, c].
    """
    B, H, W, C = x_nhwc.shape
    xp = jnp.pad(x_nhwc, ((0, 0), (pad, pad), (pad, pad), (0, 0)))
    Hp, Wp = H + 2 * pad, W + 2 * pad
    s = stride
    Hq = -(-Hp // s)
    Wq = -(-Wp // s)
    xp = jnp.pad(xp, ((0, 0), (0, Hq * s - Hp), (0, Wq * s - Wp), (0, 0)))
    x_ph = xp.reshape(B, Hq, s, Wq, s, C).transpose(0, 2, 4, 1, 3, 5)
    return x_ph.reshape(B, s * s, Hq, Wq, C), Hq, Wq


def cs_depthwise_conv2d(x_nchw, params, *, kernel_size, padding, stride, scale_factor,
                        mxu_dtype=jnp.float32, bn_eps=1e-5):
    """Fused CS_DepthWiseConv2d forward.  x_nchw: (B, Cin, H, W) -> (B, Cout, Ho, Wo)."""
    k, p, s, d = kernel_size, padding, stride, scale_factor
    w_dw = params["w_dw"].astype(jnp.float32)            # (Cin, 1, k, k)
    b_dw = params["b_dw"]                                 # (Cin,) or None
    w_pw = params["w_pw"].astype(jnp.float32)             # (Cout, Cin, 1, 1)
    b_pw = params["b_pw"]                                 # (Cout,) or None

    B, Cin, H, W = x_nchw.shape
    Cout = w_pw.shape[0]
    Ho = (H + 2 * p - d * (k - 1) - 1) // s + 1
    Wo = (W + 2 * p - d * (k - 1) - 1) // s + 1

    # NCHW -> NHWC, pad, phase decomposition (all cheap XLA glue on tiny tensors).
    x = jnp.transpose(x_nchw, (0, 2, 3, 1)).astype(jnp.float32)
    x_ph, Hq, Wq = _phase_decompose(x, p, s)

    # Fold BatchNorm (inference) + depthwise bias into the 1x1 conv weight / bias:
    #   ((dw + b_dw) * scale + shift) @ Wpw + b_pw
    #     == dw @ (scale[:,None] * Wpw) + ((b_dw*scale + shift) @ Wpw + b_pw)
    scale = params["bn_gamma"] * jax.lax.rsqrt(params["bn_var"] + bn_eps)
    shift = params["bn_beta"] - params["bn_mean"] * scale
    wdw2d = jnp.transpose(w_dw[:, 0], (1, 2, 0)).reshape(k * k, Cin)   # (k*k, Cin)
    wpw2d = jnp.transpose(w_pw[:, :, 0, 0], (1, 0))                    # (Cin, Cout)
    ch_bias = (b_dw if b_dw is not None else 0.0) * scale + shift      # (Cin,)
    wpw_eff = (scale[:, None] * wpw2d).astype(mxu_dtype)               # (Cin, Cout)
    bpw_eff = ch_bias @ wpw2d
    if b_pw is not None:
        bpw_eff = bpw_eff + b_pw
    bpw_eff = bpw_eff.reshape(1, Cout).astype(jnp.float32)

    out = pl.pallas_call(
        functools.partial(_dw_bn_pw_kernel, k=k, stride=s, dilation=d, Ho=Ho, Wo=Wo),
        out_shape=jax.ShapeDtypeStruct((B, Ho * Wo, Cout), jnp.float32),
        grid=(B,),
        in_specs=[
            pl.BlockSpec((None, s * s, Hq, Wq, Cin), lambda b: (b, 0, 0, 0, 0)),
            pl.BlockSpec((k * k, Cin), lambda b: (0, 0)),
            pl.BlockSpec((Cin, Cout), lambda b: (0, 0)),
            pl.BlockSpec((1, Cout), lambda b: (0, 0)),
        ],
        out_specs=pl.BlockSpec((None, Ho * Wo, Cout), lambda b: (b, 0, 0)),
        compiler_params=pltpu.CompilerParams(dimension_semantics=("parallel",)),
    )(x_ph, wdw2d, wpw_eff, bpw_eff)

    # (B, Ho*Wo, Cout) -> NCHW
    return jnp.transpose(out.reshape(B, Ho, Wo, Cout), (0, 3, 1, 2))


# ----------------------------------------------------------------------------
# Pure-JAX reference (matches the PyTorch module in eval mode)
# ----------------------------------------------------------------------------
def reference_forward(x_nchw, params, *, kernel_size, padding, stride, scale_factor,
                      bn_eps=1e-5):
    k, p, s, d = kernel_size, padding, stride, scale_factor
    cin = x_nchw.shape[1]
    y = jax.lax.conv_general_dilated(
        x_nchw, params["w_dw"], window_strides=(s, s), padding=((p, p), (p, p)),
        rhs_dilation=(d, d), dimension_numbers=("NCHW", "OIHW", "NCHW"),
        feature_group_count=cin)
    if params["b_dw"] is not None:
        y = y + params["b_dw"][None, :, None, None]
    scale = params["bn_gamma"] * jax.lax.rsqrt(params["bn_var"] + bn_eps)
    shift = params["bn_beta"] - params["bn_mean"] * scale
    y = y * scale[None, :, None, None] + shift[None, :, None, None]
    z = jax.lax.conv_general_dilated(
        y, params["w_pw"], window_strides=(1, 1), padding="VALID",
        dimension_numbers=("NCHW", "OIHW", "NCHW"))
    if params["b_pw"] is not None:
        z = z + params["b_pw"][None, :, None, None]
    return z


def make_params(key, cin, cout, k):
    ks = jax.random.split(key, 8)
    nrm = lambda kk, shape, sc: jax.random.normal(kk, shape, jnp.float32) * sc
    return dict(
        w_dw=nrm(ks[0], (cin, 1, k, k), 0.1),
        b_dw=nrm(ks[1], (cin,), 0.05),
        w_pw=nrm(ks[2], (cout, cin, 1, 1), 0.1),
        b_pw=nrm(ks[3], (cout,), 0.05),
        bn_gamma=1.0 + nrm(ks[4], (cin,), 0.1),
        bn_beta=nrm(ks[5], (cin,), 0.1),
        bn_mean=nrm(ks[6], (cin,), 0.1),
        bn_var=1.0 + jnp.abs(nrm(ks[7], (cin,), 0.2)),
    )


if __name__ == "__main__":
    root = jax.random.PRNGKey(0)

    configs = [
        # (name, B, Cin, Cout, H, W, k, pad, stride, dilation, mxu_dtype, atol)
        ("to_q_like",  2, 48,  64, 16, 16, 3, 1, 1, 1, jnp.float32,  1e-3),
        ("to_kv_like", 2, 48, 128, 16, 16, 3, 1, 2, 1, jnp.bfloat16, 5e-2),
        ("dilated",    2, 32,  64, 16, 16, 3, 2, 2, 2, jnp.float32,  1e-3),
    ]

    for idx, (name, B, Cin, Cout, H, W, k, p, s, d, mxu, atol) in enumerate(configs):
        key = jax.random.fold_in(root, idx)
        kx, kp = jax.random.split(key)
        x = jax.random.normal(kx, (B, Cin, H, W), jnp.float32)
        params = make_params(kp, Cin, Cout, k)

        fwd = jax.jit(functools.partial(
            cs_depthwise_conv2d, kernel_size=k, padding=p, stride=s,
            scale_factor=d, mxu_dtype=mxu))
        out = fwd(x, params)
        jax.block_until_ready(out)

        ref = reference_forward(x, params, kernel_size=k, padding=p, stride=s,
                                scale_factor=d)
        ref = jax.block_until_ready(ref)

        Ho = (H + 2 * p - d * (k - 1) - 1) // s + 1
        Wo = (W + 2 * p - d * (k - 1) - 1) // s + 1
        assert out.shape == (B, Cout, Ho, Wo), (name, out.shape)
        assert bool(jnp.all(jnp.isfinite(out))), name
        err = float(jnp.max(jnp.abs(out - ref)))
        assert err < atol, (name, err)

    print("KERNEL_OK")
</pallas_src>

<mosaic_0001>
module attributes {stable_mosaic.version = 11 : i64} {
  func.func @_dw_bn_pw_kernel(%arg0: i32, %arg1: memref<1x1x18x18x48xf32, #tpu.memory_space<vmem>>, %arg2: memref<9x48xf32, #tpu.memory_space<vmem>>, %arg3: memref<48x64xf32, #tpu.memory_space<vmem>>, %arg4: memref<1x64xf32, #tpu.memory_space<vmem>>, %arg5: memref<1x256x64xf32, #tpu.memory_space<vmem>>) attributes {dimension_semantics = [#tpu.dimension_semantics<parallel>], iteration_bounds = array<i64: 2>, scalar_prefetch = 0 : i64, scratch_operands = 0 : i64, tpu.core_type = #tpu.core_type<tc>, window_params = [{transform_indices = @transform_0, window_bounds = array<i64: 1, 1, 18, 18, 48>}, {pipeline_mode = #tpu.pipeline_mode<synchronous>, transform_indices = @transform_1, window_bounds = array<i64: 9, 48>}, {pipeline_mode = #tpu.pipeline_mode<synchronous>, transform_indices = @transform_2, window_bounds = array<i64: 48, 64>}, {pipeline_mode = #tpu.pipeline_mode<synchronous>, transform_indices = @transform_3, window_bounds = array<i64: 1, 64>}, {transform_indices = @transform_4, window_bounds = array<i64: 1, 256, 64>}]} {
    %c0 = arith.constant 0 : index
    %c0_0 = arith.constant 0 : index
    %c0_1 = arith.constant 0 : index
    %c0_2 = arith.constant 0 : index
    %c0_3 = arith.constant 0 : index
    %0 = vector.load %arg1[%c0, %c0_0, %c0_1, %c0_2, %c0_3] : memref<1x1x18x18x48xf32, #tpu.memory_space<vmem>>, vector<1x1x16x16x48xf32>
    %1 = vector.shape_cast %0 : vector<1x1x16x16x48xf32> to vector<1x16x16x48xf32>
    %c0_4 = arith.constant 0 : index
    %c0_5 = arith.constant 0 : index
    %2 = vector.load %arg2[%c0_4, %c0_5] : memref<9x48xf32, #tpu.memory_space<vmem>>, vector<1x48xf32>
    %3 = vector.shape_cast %2 : vector<1x48xf32> to vector<1x1x1x48xf32>
    %4 = vector.broadcast %3 : vector<1x1x1x48xf32> to vector<1x16x16x48xf32>
    %5 = arith.mulf %1, %4 : vector<1x16x16x48xf32>
    %c0_6 = arith.constant 0 : index
    %c0_7 = arith.constant 0 : index
    %c0_8 = arith.constant 0 : index
    %c1 = arith.constant 1 : index
    %c0_9 = arith.constant 0 : index
    %6 = vector.load %arg1[%c0_6, %c0_7, %c0_8, %c1, %c0_9] : memref<1x1x18x18x48xf32, #tpu.memory_space<vmem>>, vector<1x1x16x16x48xf32>
    %7 = vector.shape_cast %6 : vector<1x1x16x16x48xf32> to vector<1x16x16x48xf32>
    %c1_10 = arith.constant 1 : index
    %c0_11 = arith.constant 0 : index
    %8 = vector.load %arg2[%c1_10, %c0_11] : memref<9x48xf32, #tpu.memory_space<vmem>>, vector<1x48xf32>
    %9 = vector.shape_cast %8 : vector<1x48xf32> to vector<1x1x1x48xf32>
    %10 = vector.broadcast %9 : vector<1x1x1x48xf32> to vector<1x16x16x48xf32>
    %11 = arith.mulf %7, %10 : vector<1x16x16x48xf32>
    %12 = arith.addf %5, %11 : vector<1x16x16x48xf32>
    %c0_12 = arith.constant 0 : index
    %c0_13 = arith.constant 0 : index
    %c0_14 = arith.constant 0 : index
    %c2 = arith.constant 2 : index
    %c0_15 = arith.constant 0 : index
    %13 = vector.load %arg1[%c0_12, %c0_13, %c0_14, %c2, %c0_15] : memref<1x1x18x18x48xf32, #tpu.memory_space<vmem>>, vector<1x1x16x16x48xf32>
    %14 = vector.shape_cast %13 : vector<1x1x16x16x48xf32> to vector<1x16x16x48xf32>
    %c2_16 = arith.constant 2 : index
    %c0_17 = arith.constant 0 : index
    %15 = vector.load %arg2[%c2_16, %c0_17] : memref<9x48xf32, #tpu.memory_space<vmem>>, vector<1x48xf32>
    %16 = vector.shape_cast %15 : vector<1x48xf32> to vector<1x1x1x48xf32>
    %17 = vector.broadcast %16 : vector<1x1x1x48xf32> to vector<1x16x16x48xf32>
    %18 = arith.mulf %14, %17 : vector<1x16x16x48xf32>
    %19 = arith.addf %12, %18 : vector<1x16x16x48xf32>
    %c0_18 = arith.constant 0 : index
    %c0_19 = arith.constant 0 : index
    %c1_20 = arith.constant 1 : index
    %c0_21 = arith.constant 0 : index
    %c0_22 = arith.constant 0 : index
    %20 = vector.load %arg1[%c0_18, %c0_19, %c1_20, %c0_21, %c0_22] : memref<1x1x18x18x48xf32, #tpu.memory_space<vmem>>, vector<1x1x16x16x48xf32>
    %21 = vector.shape_cast %20 : vector<1x1x16x16x48xf32> to vector<1x16x16x48xf32>
    %c3 = arith.constant 3 : index
    %c0_23 = arith.constant 0 : index
    %22 = vector.load %arg2[%c3, %c0_23] : memref<9x48xf32, #tpu.memory_space<vmem>>, vector<1x48xf32>
    %23 = vector.shape_cast %22 : vector<1x48xf32> to vector<1x1x1x48xf32>
    %24 = vector.broadcast %23 : vector<1x1x1x48xf32> to vector<1x16x16x48xf32>
    %25 = arith.mulf %21, %24 : vector<1x16x16x48xf32>
    %26 = arith.addf %19, %25 : vector<1x16x16x48xf32>
    %c0_24 = arith.constant 0 : index
    %c0_25 = arith.constant 0 : index
    %c1_26 = arith.constant 1 : index
    %c1_27 = arith.constant 1 : index
    %c0_28 = arith.constant 0 : index
    %27 = vector.load %arg1[%c0_24, %c0_25, %c1_26, %c1_27, %c0_28] : memref<1x1x18x18x48xf32, #tpu.memory_space<vmem>>, vector<1x1x16x16x48xf32>
    %28 = vector.shape_cast %27 : vector<1x1x16x16x48xf32> to vector<1x16x16x48xf32>
    %c4 = arith.constant 4 : index
    %c0_29 = arith.constant 0 : index
    %29 = vector.load %arg2[%c4, %c0_29] : memref<9x48xf32, #tpu.memory_space<vmem>>, vector<1x48xf32>
    %30 = vector.shape_cast %29 : vector<1x48xf32> to vector<1x1x1x48xf32>
    %31 = vector.broadcast %30 : vector<1x1x1x48xf32> to vector<1x16x16x48xf32>
    %32 = arith.mulf %28, %31 : vector<1x16x16x48xf32>
    %33 = arith.addf %26, %32 : vector<1x16x16x48xf32>
    %c0_30 = arith.constant 0 : index
    %c0_31 = arith.constant 0 : index
    %c1_32 = arith.constant 1 : index
    %c2_33 = arith.constant 2 : index
    %c0_34 = arith.constant 0 : index
    %34 = vector.load %arg1[%c0_30, %c0_31, %c1_32, %c2_33, %c0_34] : memref<1x1x18x18x48xf32, #tpu.memory_space<vmem>>, vector<1x1x16x16x48xf32>
    %35 = vector.shape_cast %34 : vector<1x1x16x16x48xf32> to vector<1x16x16x48xf32>
    %c5 = arith.constant 5 : index
    %c0_35 = arith.constant 0 : index
    %36 = vector.load %arg2[%c5, %c0_35] : memref<9x48xf32, #tpu.memory_space<vmem>>, vector<1x48xf32>
    %37 = vector.shape_cast %36 : vector<1x48xf32> to vector<1x1x1x48xf32>
    %38 = vector.broadcast %37 : vector<1x1x1x48xf32> to vector<1x16x16x48xf32>
    %39 = arith.mulf %35, %38 : vector<1x16x16x48xf32>
    %40 = arith.addf %33, %39 : vector<1x16x16x48xf32>
    %c0_36 = arith.constant 0 : index
    %c0_37 = arith.constant 0 : index
    %c2_38 = arith.constant 2 : index
    %c0_39 = arith.constant 0 : index
    %c0_40 = arith.constant 0 : index
    %41 = vector.load %arg1[%c0_36, %c0_37, %c2_38, %c0_39, %c0_40] : memref<1x1x18x18x48xf32, #tpu.memory_space<vmem>>, vector<1x1x16x16x48xf32>
    %42 = vector.shape_cast %41 : vector<1x1x16x16x48xf32> to vector<1x16x16x48xf32>
    %c6 = arith.constant 6 : index
    %c0_41 = arith.constant 0 : index
    %43 = vector.load %arg2[%c6, %c0_41] : memref<9x48xf32, #tpu.memory_space<vmem>>, vector<1x48xf32>
    %44 = vector.shape_cast %43 : vector<1x48xf32> to vector<1x1x1x48xf32>
    %45 = vector.broadcast %44 : vector<1x1x1x48xf32> to vector<1x16x16x48xf32>
    %46 = arith.mulf %42, %45 : vector<1x16x16x48xf32>
    %47 = arith.addf %40, %46 : vector<1x16x16x48xf32>
    %c0_42 = arith.constant 0 : index
    %c0_43 = arith.constant 0 : index
    %c2_44 = arith.constant 2 : index
    %c1_45 = arith.constant 1 : index
    %c0_46 = arith.constant 0 : index
    %48 = vector.load %arg1[%c0_42, %c0_43, %c2_44, %c1_45, %c0_46] : memref<1x1x18x18x48xf32, #tpu.memory_space<vmem>>, vector<1x1x16x16x48xf32>
    %49 = vector.shape_cast %48 : vector<1x1x16x16x48xf32> to vector<1x16x16x48xf32>
    %c7 = arith.constant 7 : index
    %c0_47 = arith.constant 0 : index
    %50 = vector.load %arg2[%c7, %c0_47] : memref<9x48xf32, #tpu.memory_space<vmem>>, vector<1x48xf32>
    %51 = vector.shape_cast %50 : vector<1x48xf32> to vector<1x1x1x48xf32>
    %52 = vector.broadcast %51 : vector<1x1x1x48xf32> to vector<1x16x16x48xf32>
    %53 = arith.mulf %49, %52 : vector<1x16x16x48xf32>
    %54 = arith.addf %47, %53 : vector<1x16x16x48xf32>
    %c0_48 = arith.constant 0 : index
    %c0_49 = arith.constant 0 : index
    %c2_50 = arith.constant 2 : index
    %c2_51 = arith.constant 2 : index
    %c0_52 = arith.constant 0 : index
    %55 = vector.load %arg1[%c0_48, %c0_49, %c2_50, %c2_51, %c0_52] : memref<1x1x18x18x48xf32, #tpu.memory_space<vmem>>, vector<1x1x16x16x48xf32>
    %56 = vector.shape_cast %55 : vector<1x1x16x16x48xf32> to vector<1x16x16x48xf32>
    %c8 = arith.constant 8 : index
    %c0_53 = arith.constant 0 : index
    %57 = vector.load %arg2[%c8, %c0_53] : memref<9x48xf32, #tpu.memory_space<vmem>>, vector<1x48xf32>
    %58 = vector.shape_cast %57 : vector<1x48xf32> to vector<1x1x1x48xf32>
    %59 = vector.broadcast %58 : vector<1x1x1x48xf32> to vector<1x16x16x48xf32>
    %60 = arith.mulf %56, %59 : vector<1x16x16x48xf32>
    %61 = arith.addf %54, %60 : vector<1x16x16x48xf32>
    %62 = vector.shape_cast %61 : vector<1x16x16x48xf32> to vector<256x48xf32>
    %c0_54 = arith.constant 0 : index
    %c0_55 = arith.constant 0 : index
    %63 = vector.load %arg3[%c0_54, %c0_55] : memref<48x64xf32, #tpu.memory_space<vmem>>, vector<48x64xf32>
    %cst = arith.constant dense<0.000000e+00> : vector<256x64xf32>
    %64 = tpu.matmul %62, %63, %cst {dimension_numbers = #tpu.dot_dimension_numbers<[1], [0], [0], [1], [0, 0, 1, 1], [], []>} : vector<256x48xf32>, vector<48x64xf32>, vector<256x64xf32> -> vector<256x64xf32>
    %c0_56 = arith.constant 0 : index
    %c0_57 = arith.constant 0 : index
    %65 = vector.load %arg4[%c0_56, %c0_57] : memref<1x64xf32, #tpu.memory_space<vmem>>, vector<1x64xf32>
    %66 = vector.broadcast %65 : vector<1x64xf32> to vector<256x64xf32>
    %67 = arith.addf %64, %66 : vector<256x64xf32>
    %c0_58 = arith.constant 0 : index
    %c0_59 = arith.constant 0 : index
    %c0_60 = arith.constant 0 : index
    %68 = vector.load %arg5[%c0_58, %c0_59, %c0_60] : memref<1x256x64xf32, #tpu.memory_space<vmem>>, vector<1x256x64xf32>
    %69 = vector.shape_cast %68 : vector<1x256x64xf32> to vector<256x64xf32>
    %70 = vector.shape_cast %67 : vector<256x64xf32> to vector<1x256x64xf32>
    tpu.vector_store %arg5[%c0_58, %c0_59, %c0_60], %70 {strides = array<i32>} : memref<1x256x64xf32, #tpu.memory_space<vmem>>, vector<1x256x64xf32>,
    return
  }
  func.func @transform_0(%arg0: i32) -> (i32, i32, i32, i32, i32) {
    %c0_i32 = arith.constant 0 : i32
    %c0_i32_0 = arith.constant 0 : i32
    %c0_i32_1 = arith.constant 0 : i32
    %c0_i32_2 = arith.constant 0 : i32
    %c0_i32_3 = arith.constant 0 : i32
    return %arg0, %c0_i32, %c0_i32_0, %c0_i32_1, %c0_i32_2 : i32, i32, i32, i32, i32
  }
  func.func @transform_1(%arg0: i32) -> (i32, i32) {
    %c0_i32 = arith.constant 0 : i32
    %c0_i32_0 = arith.constant 0 : i32
    %c0_i32_1 = arith.constant 0 : i32
    return %c0_i32, %c0_i32_0 : i32, i32
  }
  func.func @transform_2(%arg0: i32) -> (i32, i32) {
    %c0_i32 = arith.constant 0 : i32
    %c0_i32_0 = arith.constant 0 : i32
    %c0_i32_1 = arith.constant 0 : i32
    return %c0_i32, %c0_i32_0 : i32, i32
  }
  func.func @transform_3(%arg0: i32) -> (i32, i32) {
    %c0_i32 = arith.constant 0 : i32
    %c0_i32_0 = arith.constant 0 : i32
    %c0_i32_1 = arith.constant 0 : i32
    return %c0_i32, %c0_i32_0 : i32, i32
  }
  func.func @transform_4(%arg0: i32) -> (i32, i32, i32) {
    %c0_i32 = arith.constant 0 : i32
    %c0_i32_0 = arith.constant 0 : i32
    %c0_i32_1 = arith.constant 0 : i32
    return %arg0, %c0_i32, %c0_i32_0 : i32, i32, i32
  }
}

</mosaic_0001>

<llo_original>
// kernel: cs_depthwise_conv2d.1
$region0: #{cs_depthwise_conv2d.1}
  #allocation0 [shape = 'u32[]', space=smem, size = 0x4, offset = 0x4, fixed_abs, tag = 'smem constant byte address 0x4 - core index']
  #allocation1 [shape = 'u32[144,128]{1,0:T(1,128)}', space=vmem, size = 0x12000, scoped, tag = 'internal scratch']
  %s0 = inlined_call_operand.vmem [shape: f32[2,1,18,18,48], index: 0, kind: input, shape index: {}]
  %s1 = inlined_call_operand.vmem [shape: f32[9,48], index: 1, kind: input, shape index: {}]
  %s2 = inlined_call_operand.vmem [shape: f32[48,64], index: 2, kind: input, shape index: {}]
  %s3 = inlined_call_operand.vmem [shape: f32[1,64], index: 3, kind: input, shape index: {}]
  %s4 = inlined_call_operand.hbm [shape: f32[2,256,64], index: 4, kind: output, shape index: {}]
  %s5 = sld [smem:[#allocation0]]
  $region49: #{cs_depthwise_conv2d.1} parent=0
    _
  %s7 = ssub.s32 1, %s5
  %s8 = scalar_select 0, %s7, %s5
  $region1: #{cs_depthwise_conv2d.1} parent=0
    #allocation2 [shape = 'u8[262144]{0}', space=vmem, size = 0x40000, scoped, tag = 'output window, operand 0']
    #allocation3 [shape = 's32[2]{0}', space=sflag, size = 0x8, scoped, tag = 'scoped memory for cs_depthwise_conv2d.1']
    %9 = vsyncpa [#allocation3], 0
    %s10 = scalar_lea.sflag [#allocation3], 1
    %11 = vsyncpa %s10, 0
    loop: start=0, step=1, limit=4
    $region2: #{cs_depthwise_conv2d.1} parent=1 // loop_pre_header
      _
    $region3: #{cs_depthwise_conv2d.1} parent=1 // loop_header
      %s13 = sphi 0, %s17
      %p14 = scmp.ge.s32.totalorder %s13, 4
      %s23 = sphi 0, %s25
      %s26 = sphi 0, %s23
      %s27 = sphi 0, %s26
      %s43 = sphi 0, %s27
      %s47 = sphi 0, %s47
      %s49 = sphi 0, %s47
      %s50 = sphi 0, %s49
      %s64 = sphi 0, %s50
      %s68 = sphi 0, %s68
      %s70 = sphi 0, %s68
      %s71 = sphi 0, %s70
      %s85 = sphi 0, %s71
      %s89 = sphi 0, %s89
      %s91 = sphi 0, %s89
      %s92 = sphi 0, %s91
      %s106 = sphi 0, %s92
      %s112 = sphi 0, %s114
      %s115 = sphi 0, %s112
      %s116 = sphi 0, %s115
      %s132 = sphi 0, %s116
    $region4: #{cs_depthwise_conv2d.1} parent=1 // loop_header_branch
      %16 = sbr.rel (%p14) target = $region8
    $region5: #{cs_depthwise_conv2d.1} parent=1 // loop_body
      %s18 = ssub.s32 %s13, 1
      %s19 = ssub.s32 %s13, 2
      %s20 = sadd.s32 %s13, 1
      %s21 = ssub.s32 %s13, %s20
      %p22 = scmp.eq.s32.totalorder %s21, 0
      %s24 = sadd.s32 %s23, 1
      %s25 = scalar_select %p22, %s23, %s24
      %p28 = pneg %p22
      %p29 = scmp.eq.s32.totalorder %s13, 1
      %p30 = por %p28, %p29
      %p31 = scmp.ne.s32.totalorder %s23, %s26
      %p32 = scmp.eq.s32.totalorder %s13, 0
      %p33 = por %p31, %p32
      %p34 = scmp.ne.s32.totalorder %s23, %s26
      %p35 = scmp.eq.s32.totalorder %s18, 1
      %p36 = por %p34, %p35
      %p37 = scmp.ne.s32.totalorder %s26, %s27
      %p38 = scmp.eq.s32.totalorder %s18, 0
      %p39 = por %p37, %p38
      %p40 = scmp.ne.s32.totalorder %s26, %s27
      %p41 = scmp.eq.s32.totalorder %s19, 1
      %p42 = por %p40, %p41
      %p44 = scmp.ne.s32.totalorder %s27, %s43
      %p45 = scmp.eq.s32.totalorder %s19, 0
      %p46 = por %p44, %p45
      %s48 = sadd.s32 %s47, 1
      %p51 = scmp.eq.s32.totalorder %s13, 1
      %p52 = scmp.ne.s32.totalorder %s47, %s49
      %p53 = scmp.eq.s32.totalorder %s13, 0
      %p54 = por %p52, %p53
      %p55 = scmp.ne.s32.totalorder %s47, %s49
      %p56 = scmp.eq.s32.totalorder %s18, 1
      %p57 = por %p55, %p56
      %p58 = scmp.ne.s32.totalorder %s49, %s50
      %p59 = scmp.eq.s32.totalorder %s18, 0
      %p60 = por %p58, %p59
      %p61 = scmp.ne.s32.totalorder %s49, %s50
      %p62 = scmp.eq.s32.totalorder %s19, 1
      %p63 = por %p61, %p62
      %p65 = scmp.ne.s32.totalorder %s50, %s64
      %p66 = scmp.eq.s32.totalorder %s19, 0
      %p67 = por %p65, %p66
      %s69 = sadd.s32 %s68, 1
      %p72 = scmp.eq.s32.totalorder %s13, 1
      %p73 = scmp.ne.s32.totalorder %s68, %s70
      %p74 = scmp.eq.s32.totalorder %s13, 0
      %p75 = por %p73, %p74
      %p76 = scmp.ne.s32.totalorder %s68, %s70
      %p77 = scmp.eq.s32.totalorder %s18, 1
      %p78 = por %p76, %p77
      %p79 = scmp.ne.s32.totalorder %s70, %s71
      %p80 = scmp.eq.s32.totalorder %s18, 0
      %p81 = por %p79, %p80
      %p82 = scmp.ne.s32.totalorder %s70, %s71
      %p83 = scmp.eq.s32.totalorder %s19, 1
      %p84 = por %p82, %p83
      %p86 = scmp.ne.s32.totalorder %s71, %s85
      %p87 = scmp.eq.s32.totalorder %s19, 0
      %p88 = por %p86, %p87
      %s90 = sadd.s32 %s89, 1
      %p93 = scmp.eq.s32.totalorder %s13, 1
      %p94 = scmp.ne.s32.totalorder %s89, %s91
      %p95 = scmp.eq.s32.totalorder %s13, 0
      %p96 = por %p94, %p95
      %p97 = scmp.ne.s32.totalorder %s89, %s91
      %p98 = scmp.eq.s32.totalorder %s18, 1
      %p99 = por %p97, %p98
      %p100 = scmp.ne.s32.totalorder %s91, %s92
      %p101 = scmp.eq.s32.totalorder %s18, 0
      %p102 = por %p100, %p101
      %p103 = scmp.ne.s32.totalorder %s91, %s92
      %p104 = scmp.eq.s32.totalorder %s19, 1
      %p105 = por %p103, %p104
      %p107 = scmp.ne.s32.totalorder %s92, %s106
      %p108 = scmp.eq.s32.totalorder %s19, 0
      %p109 = por %p107, %p108
      %s110 = ssub.s32 %s13, %s20
      %p111 = scmp.eq.s32.totalorder %s110, 0
      %s113 = sadd.s32 %s112, 1
      %s114 = scalar_select %p111, %s112, %s113
      %p117 = pneg %p111
      %p118 = scmp.eq.s32.totalorder %s13, 1
      %p119 = por %p117, %p118
      %p120 = scmp.ne.s32.totalorder %s112, %s115
      %p121 = scmp.eq.s32.totalorder %s13, 0
      %p122 = por %p120, %p121
      %p123 = scmp.ne.s32.totalorder %s112, %s115
      %p124 = scmp.eq.s32.totalorder %s18, 1
      %p125 = por %p123, %p124
      %p126 = scmp.ne.s32.totalorder %s115, %s116
      %p127 = scmp.eq.s32.totalorder %s18, 0
      %p128 = por %p126, %p127
      %p129 = scmp.ne.s32.totalorder %s115, %s116
      %p130 = scmp.eq.s32.totalorder %s19, 1
      %p131 = por %p129, %p130
      %p133 = scmp.ne.s32.totalorder %s116, %s132
      %p134 = scmp.eq.s32.totalorder %s19, 0
      %p135 = por %p133, %p134
      %p136 = scmp.le.s32.totalorder 1, %s13
      %p137 = scmp.lt.s32.totalorder %s13, 3
      %p138 = pnand %p136, %p137
      %p139 = pneg %p138
      // Predicated region
      $region9: #{cs_depthwise_conv2d.1} parent=5 // pred_check
        _
      $region10: #{cs_depthwise_conv2d.1} parent=5 // pred_check_branch
        %141 = sbr.rel (%p138) target = $region12
      $region11: #{cs_depthwise_conv2d.1} parent=5 // pred_region
        %s142 = ssub.s32 %s13, 1
        // Predicated region
        $region13: #{cs_depthwise_conv2d.1} parent=11 // pred_check
          %p143 = pneg %p60
        $region14: #{cs_depthwise_conv2d.1} parent=11 // pred_check_branch
          %145 = sbr.rel (%p143) target = $region16
        $region15: #{cs_depthwise_conv2d.1} parent=11 // pred_region
          _
        $region16: #{cs_depthwise_conv2d.1} parent=11 // pred_fallthru
          _
        // Predicated region
        $region17: #{cs_depthwise_conv2d.1} parent=11 // pred_check
          %p146 = pneg %p81
        $region18: #{cs_depthwise_conv2d.1} parent=11 // pred_check_branch
          %148 = sbr.rel (%p146) target = $region20
        $region19: #{cs_depthwise_conv2d.1} parent=11 // pred_region
          _
        $region20: #{cs_depthwise_conv2d.1} parent=11 // pred_fallthru
          _
        // Predicated region
        $region21: #{cs_depthwise_conv2d.1} parent=11 // pred_check
          %p149 = pneg %p102
        $region22: #{cs_depthwise_conv2d.1} parent=11 // pred_check_branch
          %151 = sbr.rel (%p149) target = $region24
        $region23: #{cs_depthwise_conv2d.1} parent=11 // pred_region
          _
        $region24: #{cs_depthwise_conv2d.1} parent=11 // pred_fallthru
          _
      $region12: #{cs_depthwise_conv2d.1} parent=5 // pred_fallthru
        _
      %p152 = scmp.lt.s32.totalorder %s13, 2
      // Predicated region
      $region25: #{cs_depthwise_conv2d.1} parent=5 // pred_check
        %p153 = pneg %p152
      $region26: #{cs_depthwise_conv2d.1} parent=5 // pred_check_branch
        %155 = sbr.rel (%p153) target = $region28
      $region27: #{cs_depthwise_conv2d.1} parent=5 // pred_region
        // Predicated region
        $region29: #{cs_depthwise_conv2d.1} parent=27 // pred_check
          %p156 = pneg %p33
        $region30: #{cs_depthwise_conv2d.1} parent=27 // pred_check_branch
          %158 = sbr.rel (%p156) target = $region32
        $region31: #{cs_depthwise_conv2d.1} parent=27 // pred_region
          %p159 = scmp.lt.s32.totalorder %s13, 1
          %s160 = scalar_select %p159, %s13, 1
          %s161 = smul.addr %s160, 54
          %s162 = smul.addr %s161, 8
          %s163 = scalar_lea.vmem %s0, %s162
        $region32: #{cs_depthwise_conv2d.1} parent=27 // pred_fallthru
          _
      $region28: #{cs_depthwise_conv2d.1} parent=5 // pred_fallthru
        _
      %p164 = scmp.le.s32.totalorder 1, %s13
      %p165 = scmp.lt.s32.totalorder %s13, 3
      %p166 = pnand %p164, %p165
      %p167 = pneg %p166
      // Predicated region
      $region33: #{cs_depthwise_conv2d.1} parent=5 // pred_check
        _
      $region34: #{cs_depthwise_conv2d.1} parent=5 // pred_check_branch
        %169 = sbr.rel (%p166) target = $region36
      $region35: #{cs_depthwise_conv2d.1} parent=5 // pred_region
        %s170 = ssub.s32 %s13, 1
        %p171 = scmp.lt.s32.totalorder %s18, 1
        %s172 = scalar_select %p171, %s18, 1
        %s173 = smul.addr %s172, 54
        %s174 = smul.addr %s173, 8
        %s175 = scalar_lea.vmem %s0, %s174
        %p176 = pneg %p39
        %p177 = pneg %p36
        %p178 = pneg %p60
        %p179 = pneg %p57
        %p180 = pneg %p81
        %p181 = pneg %p78
        %p182 = pneg %p102
        %p183 = pneg %p99
        %p184 = pneg %p128
        %p185 = pneg %p125
        %s186 = sand.u32 %s115, 1
        %s187 = scalar_lea.sflag [#allocation3], %s186
        %s188 = sand.u32 %s115, 1
        %s189 = smul.addr %s188, 256
        %s190 = scalar_lea.vmem [#allocation2], %s189
        %p191 = scmp.lt.s32.totalorder %s18, 1
        %s192 = scalar_select %p191, %s18, 1
        %s193 = smul.addr %s192, 54
        %s194 = smul.addr %s193, 8
        %s195 = scalar_lea.vmem %s0, %s194
        %v196 = vld [vmem:[%s195] sm:$0xff]
        %v197 = vld [vmem:[%s195 + $0x8] sm:$0xff]
        %v198 = vld [vmem:[%s195 + $0x18] sm:$0xff]
        %v199 = vld [vmem:[%s195 + $0x20] sm:$0xff]
        %v200 = vld [vmem:[%s195 + $0x30] sm:$0xff]
        %v201 = vld [vmem:[%s195 + $0x38] sm:$0xff]
        %v202 = vld [vmem:[%s195 + $0x48] sm:$0xff]
        %v203 = vld [vmem:[%s195 + $0x50] sm:$0xff]
        %v204 = vld [vmem:[%s195 + $0x60] sm:$0xff]
        %v205 = vld [vmem:[%s195 + $0x68] sm:$0xff]
        %v206 = vld [vmem:[%s195 + $0x78] sm:$0xff]
        %v207 = vld [vmem:[%s195 + $0x80] sm:$0xff]
        %v208 = vld [vmem:[%s195 + $0x90] sm:$0xff]
        %v209 = vld [vmem:[%s195 + $0x98] sm:$0xff]
        %v210 = vld [vmem:[%s195 + $0xa8] sm:$0xff]
        %v211 = vld [vmem:[%s195 + $0xb0] sm:$0xff]
        %v212 = vld [vmem:[%s195 + $0xc0] sm:$0xff]
        %v213 = vld [vmem:[%s195 + $0xc8] sm:$0xff]
        %v214 = vld [vmem:[%s195 + $0xd8] sm:$0xff]
        %v215 = vld [vmem:[%s195 + $0xe0] sm:$0xff]
        %v216 = vld [vmem:[%s195 + $0xf0] sm:$0xff]
        %v217 = vld [vmem:[%s195 + $0xf8] sm:$0xff]
        %v218 = vld [vmem:[%s195 + $0x108] sm:$0xff]
        %v219 = vld [vmem:[%s195 + $0x110] sm:$0xff]
        %v220 = vld [vmem:[%s195 + $0x120] sm:$0xff]
        %v221 = vld [vmem:[%s195 + $0x128] sm:$0xff]
        %v222 = vld [vmem:[%s195 + $0x138] sm:$0xff]
        %v223 = vld [vmem:[%s195 + $0x140] sm:$0xff]
        %v224 = vld [vmem:[%s195 + $0x150] sm:$0xff]
        %v225 = vld [vmem:[%s195 + $0x158] sm:$0xff]
        %v226 = vld [vmem:[%s195 + $0x168] sm:$0xff]
        %v227 = vld [vmem:[%s195 + $0x170] sm:$0xff]
        %v228 = vld [vmem:[%s1] sm:$0x1]
        %v229 = vlaneseq
        %v230 = vshrl.u32 %v229, 7
        %v231 = vsub.s32 0, %v230
        %v232 = vrot.slane %v228, %v231
        %v233 = vmul.f32 %v196, %v232
        %v234 = vmul.f32 %v197, %v232
        %v235 = vmul.f32 %v198, %v232
        %v236 = vmul.f32 %v199, %v232
        %v237 = vmul.f32 %v200, %v232
        %v238 = vmul.f32 %v201, %v232
        %v239 = vmul.f32 %v202, %v232
        %v240 = vmul.f32 %v203, %v232
        %v241 = vmul.f32 %v204, %v232
        %v242 = vmul.f32 %v205, %v232
        %v243 = vmul.f32 %v206, %v232
        %v244 = vmul.f32 %v207, %v232
        %v245 = vmul.f32 %v208, %v232
        %v246 = vmul.f32 %v209, %v232
        %v247 = vmul.f32 %v210, %v232
        %v248 = vmul.f32 %v211, %v232
        %v249 = vmul.f32 %v212, %v232
        %v250 = vmul.f32 %v213, %v232
        %v251 = vmul.f32 %v214, %v232
        %v252 = vmul.f32 %v215, %v232
        %v253 = vmul.f32 %v216, %v232
        %v254 = vmul.f32 %v217, %v232
        %v255 = vmul.f32 %v218, %v232
        %v256 = vmul.f32 %v219, %v232
        %v257 = vmul.f32 %v220, %v232
        %v258 = vmul.f32 %v221, %v232
        %v259 = vmul.f32 %v222, %v232
        %v260 = vmul.f32 %v223, %v232
        %v261 = vmul.f32 %v224, %v232
        %v262 = vmul.f32 %v225, %v232
        %v263 = vmul.f32 %v226, %v232
        %v264 = vmul.f32 %v227, %v232
        %v265 = vld [vmem:[%s195 + $0x1] sm:$0xff]
        %v266 = vld [vmem:[%s195 + $0x9] sm:$0xff]
        %v267 = vld [vmem:[%s195 + $0x19] sm:$0xff]
        %v268 = vld [vmem:[%s195 + $0x21] sm:$0xff]
        %v269 = vld [vmem:[%s195 + $0x31] sm:$0xff]
        %v270 = vld [vmem:[%s195 + $0x39] sm:$0xff]
        %v271 = vld [vmem:[%s195 + $0x49] sm:$0xff]
        %v272 = vld [vmem:[%s195 + $0x51] sm:$0xff]
        %v273 = vld [vmem:[%s195 + $0x61] sm:$0xff]
        %v274 = vld [vmem:[%s195 + $0x69] sm:$0xff]
        %v275 = vld [vmem:[%s195 + $0x79] sm:$0xff]
        %v276 = vld [vmem:[%s195 + $0x81] sm:$0xff]
        %v277 = vld [vmem:[%s195 + $0x91] sm:$0xff]
        %v278 = vld [vmem:[%s195 + $0x99] sm:$0xff]
        %v279 = vld [vmem:[%s195 + $0xa9] sm:$0xff]
        %v280 = vld [vmem:[%s195 + $0xb1] sm:$0xff]
        %v281 = vld [vmem:[%s195 + $0xc1] sm:$0xff]
        %v282 = vld [vmem:[%s195 + $0xc9] sm:$0xff]
        %v283 = vld [vmem:[%s195 + $0xd9] sm:$0xff]
        %v284 = vld [vmem:[%s195 + $0xe1] sm:$0xff]
        %v285 = vld [vmem:[%s195 + $0xf1] sm:$0xff]
        %v286 = vld [vmem:[%s195 + $0xf9] sm:$0xff]
        %v287 = vld [vmem:[%s195 + $0x109] sm:$0xff]
        %v288 = vld [vmem:[%s195 + $0x111] sm:$0xff]
        %v289 = vld [vmem:[%s195 + $0x121] sm:$0xff]
        %v290 = vld [vmem:[%s195 + $0x129] sm:$0xff]
        %v291 = vld [vmem:[%s195 + $0x139] sm:$0xff]
        %v292 = vld [vmem:[%s195 + $0x141] sm:$0xff]
        %v293 = vld [vmem:[%s195 + $0x151] sm:$0xff]
        %v294 = vld [vmem:[%s195 + $0x159] sm:$0xff]
        %v295 = vld [vmem:[%s195 + $0x169] sm:$0xff]
        %v296 = vld [vmem:[%s195 + $0x171] sm:$0xff]
        %v297 = vld [vmem:[%s1 + $0x1] sm:$0x1]
        %v298 = vlaneseq
        %v299 = vshrl.u32 %v298, 7
        %v300 = vsub.s32 0, %v299
        %v301 = vrot.slane %v297, %v300
        %v302 = vmul.f32 %v265, %v301
        %v303 = vmul.f32 %v266, %v301
        %v304 = vmul.f32 %v267, %v301
        %v305 = vmul.f32 %v268, %v301
        %v306 = vmul.f32 %v269, %v301
        %v307 = vmul.f32 %v270, %v301
        %v308 = vmul.f32 %v271, %v301
        %v309 = vmul.f32 %v272, %v301
        %v310 = vmul.f32 %v273, %v301
        %v311 = vmul.f32 %v274, %v301
        %v312 = vmul.f32 %v275, %v301
        %v313 = vmul.f32 %v276, %v301
        %v314 = vmul.f32 %v277, %v301
        %v315 = vmul.f32 %v278, %v301
        %v316 = vmul.f32 %v279, %v301
        %v317 = vmul.f32 %v280, %v301
        %v318 = vmul.f32 %v281, %v301
        %v319 = vmul.f32 %v282, %v301
        %v320 = vmul.f32 %v283, %v301
        %v321 = vmul.f32 %v284, %v301
        %v322 = vmul.f32 %v285, %v301
        %v323 = vmul.f32 %v286, %v301
        %v324 = vmul.f32 %v287, %v301
        %v325 = vmul.f32 %v288, %v301
        %v326 = vmul.f32 %v289, %v301
        %v327 = vmul.f32 %v290, %v301
        %v328 = vmul.f32 %v291, %v301
        %v329 = vmul.f32 %v292, %v301
        %v330 = vmul.f32 %v293, %v301
        %v331 = vmul.f32 %v294, %v301
        %v332 = vmul.f32 %v295, %v301
        %v333 = vmul.f32 %v296, %v301
        %v334 = vadd.f32 %v233, %v302
        %v335 = vadd.f32 %v234, %v303
        %v336 = vadd.f32 %v235, %v304
        %v337 = vadd.f32 %v236, %v305
        %v338 = vadd.f32 %v237, %v306
        %v339 = vadd.f32 %v238, %v307
        %v340 = vadd.f32 %v239, %v308
        %v341 = vadd.f32 %v240, %v309
        %v342 = vadd.f32 %v241, %v310
        %v343 = vadd.f32 %v242, %v311
        %v344 = vadd.f32 %v243, %v312
        %v345 = vadd.f32 %v244, %v313
        %v346 = vadd.f32 %v245, %v314
        %v347 = vadd.f32 %v246, %v315
        %v348 = vadd.f32 %v247, %v316
        %v349 = vadd.f32 %v248, %v317
        %v350 = vadd.f32 %v249, %v318
        %v351 = vadd.f32 %v250, %v319
        %v352 = vadd.f32 %v251, %v320
        %v353 = vadd.f32 %v252, %v321
        %v354 = vadd.f32 %v253, %v322
        %v355 = vadd.f32 %v254, %v323
        %v356 = vadd.f32 %v255, %v324
        %v357 = vadd.f32 %v256, %v325
        %v358 = vadd.f32 %v257, %v326
        %v359 = vadd.f32 %v258, %v327
        %v360 = vadd.f32 %v259, %v328
        %v361 = vadd.f32 %v260, %v329
        %v362 = vadd.f32 %v261, %v330
        %v363 = vadd.f32 %v262, %v331
        %v364 = vadd.f32 %v263, %v332
        %v365 = vadd.f32 %v264, %v333
        %v366 = vld [vmem:[%s195 + $0x2] sm:$0xff]
        %v367 = vld [vmem:[%s195 + $0xa] sm:$0xff]
        %v368 = vld [vmem:[%s195 + $0x1a] sm:$0xff]
        %v369 = vld [vmem:[%s195 + $0x22] sm:$0xff]
        %v370 = vld [vmem:[%s195 + $0x32] sm:$0xff]
        %v371 = vld [vmem:[%s195 + $0x3a] sm:$0xff]
        %v372 = vld [vmem:[%s195 + $0x4a] sm:$0xff]
        %v373 = vld [vmem:[%s195 + $0x52] sm:$0xff]
        %v374 = vld [vmem:[%s195 + $0x62] sm:$0xff]
        %v375 = vld [vmem:[%s195 + $0x6a] sm:$0xff]
        %v376 = vld [vmem:[%s195 + $0x7a] sm:$0xff]
        %v377 = vld [vmem:[%s195 + $0x82] sm:$0xff]
        %v378 = vld [vmem:[%s195 + $0x92] sm:$0xff]
        %v379 = vld [vmem:[%s195 + $0x9a] sm:$0xff]
        %v380 = vld [vmem:[%s195 + $0xaa] sm:$0xff]
        %v381 = vld [vmem:[%s195 + $0xb2] sm:$0xff]
        %v382 = vld [vmem:[%s195 + $0xc2] sm:$0xff]
        %v383 = vld [vmem:[%s195 + $0xca] sm:$0xff]
        %v384 = vld [vmem:[%s195 + $0xda] sm:$0xff]
        %v385 = vld [vmem:[%s195 + $0xe2] sm:$0xff]
        %v386 = vld [vmem:[%s195 + $0xf2] sm:$0xff]
        %v387 = vld [vmem:[%s195 + $0xfa] sm:$0xff]
        %v388 = vld [vmem:[%s195 + $0x10a] sm:$0xff]
        %v389 = vld [vmem:[%s195 + $0x112] sm:$0xff]
        %v390 = vld [vmem:[%s195 + $0x122] sm:$0xff]
        %v391 = vld [vmem:[%s195 + $0x12a] sm:$0xff]
        %v392 = vld [vmem:[%s195 + $0x13a] sm:$0xff]
        %v393 = vld [vmem:[%s195 + $0x142] sm:$0xff]
        %v394 = vld [vmem:[%s195 + $0x152] sm:$0xff]
        %v395 = vld [vmem:[%s195 + $0x15a] sm:$0xff]
        %v396 = vld [vmem:[%s195 + $0x16a] sm:$0xff]
        %v397 = vld [vmem:[%s195 + $0x172] sm:$0xff]
        %v398 = vld [vmem:[%s1 + $0x2] sm:$0x1]
        %v399 = vlaneseq
        %v400 = vshrl.u32 %v399, 7
        %v401 = vsub.s32 0, %v400
        %v402 = vrot.slane %v398, %v401
        %v403 = vmul.f32 %v366, %v402
        %v404 = vmul.f32 %v367, %v402
        %v405 = vmul.f32 %v368, %v402
        %v406 = vmul.f32 %v369, %v402
        %v407 = vmul.f32 %v370, %v402
        %v408 = vmul.f32 %v371, %v402
        %v409 = vmul.f32 %v372, %v402
        %v410 = vmul.f32 %v373, %v402
        %v411 = vmul.f32 %v374, %v402
        %v412 = vmul.f32 %v375, %v402
        %v413 = vmul.f32 %v376, %v402
        %v414 = vmul.f32 %v377, %v402
        %v415 = vmul.f32 %v378, %v402
        %v416 = vmul.f32 %v379, %v402
        %v417 = vmul.f32 %v380, %v402
        %v418 = vmul.f32 %v381, %v402
        %v419 = vmul.f32 %v382, %v402
        %v420 = vmul.f32 %v383, %v402
        %v421 = vmul.f32 %v384, %v402
        %v422 = vmul.f32 %v385, %v402
        %v423 = vmul.f32 %v386, %v402
        %v424 = vmul.f32 %v387, %v402
        %v425 = vmul.f32 %v388, %v402
        %v426 = vmul.f32 %v389, %v402
        %v427 = vmul.f32 %v390, %v402
        %v428 = vmul.f32 %v391, %v402
        %v429 = vmul.f32 %v392, %v402
        %v430 = vmul.f32 %v393, %v402
        %v431 = vmul.f32 %v394, %v402
        %v432 = vmul.f32 %v395, %v402
        %v433 = vmul.f32 %v396, %v402
        %v434 = vmul.f32 %v397, %v402
        %v435 = vadd.f32 %v334, %v403
        %v436 = vadd.f32 %v335, %v404
        %v437 = vadd.f32 %v336, %v405
        %v438 = vadd.f32 %v337, %v406
        %v439 = vadd.f32 %v338, %v407
        %v440 = vadd.f32 %v339, %v408
        %v441 = vadd.f32 %v340, %v409
        %v442 = vadd.f32 %v341, %v410
        %v443 = vadd.f32 %v342, %v411
        %v444 = vadd.f32 %v343, %v412
        %v445 = vadd.f32 %v344, %v413
        %v446 = vadd.f32 %v345, %v414
        %v447 = vadd.f32 %v346, %v415
        %v448 = vadd.f32 %v347, %v416
        %v449 = vadd.f32 %v348, %v417
        %v450 = vadd.f32 %v349, %v418
        %v451 = vadd.f32 %v350, %v419
        %v452 = vadd.f32 %v351, %v420
        %v453 = vadd.f32 %v352, %v421
        %v454 = vadd.f32 %v353, %v422
        %v455 = vadd.f32 %v354, %v423
        %v456 = vadd.f32 %v355, %v424
        %v457 = vadd.f32 %v356, %v425
        %v458 = vadd.f32 %v357, %v426
        %v459 = vadd.f32 %v358, %v427
        %v460 = vadd.f32 %v359, %v428
        %v461 = vadd.f32 %v360, %v429
        %v462 = vadd.f32 %v361, %v430
        %v463 = vadd.f32 %v362, %v431
        %v464 = vadd.f32 %v363, %v432
        %v465 = vadd.f32 %v364, %v433
        %v466 = vadd.f32 %v365, %v434
        %s467 = scalar_lea.vmem %s195, 24
        %v468 = vld [vmem:[%s467] sm:$0xff]
        %v469 = vld [vmem:[%s467 + $0x8] sm:$0xff]
        %v470 = vld [vmem:[%s467 + $0x18] sm:$0xff]
        %v471 = vld [vmem:[%s467 + $0x20] sm:$0xff]
        %v472 = vld [vmem:[%s467 + $0x30] sm:$0xff]
        %v473 = vld [vmem:[%s467 + $0x38] sm:$0xff]
        %v474 = vld [vmem:[%s467 + $0x48] sm:$0xff]
        %v475 = vld [vmem:[%s467 + $0x50] sm:$0xff]
        %v476 = vld [vmem:[%s467 + $0x60] sm:$0xff]
        %v477 = vld [vmem:[%s467 + $0x68] sm:$0xff]
        %v478 = vld [vmem:[%s467 + $0x78] sm:$0xff]
        %v479 = vld [vmem:[%s467 + $0x80] sm:$0xff]
        %v480 = vld [vmem:[%s467 + $0x90] sm:$0xff]
        %v481 = vld [vmem:[%s467 + $0x98] sm:$0xff]
        %v482 = vld [vmem:[%s467 + $0xa8] sm:$0xff]
        %v483 = vld [vmem:[%s467 + $0xb0] sm:$0xff]
        %v484 = vld [vmem:[%s467 + $0xc0] sm:$0xff]
        %v485 = vld [vmem:[%s467 + $0xc8] sm:$0xff]
        %v486 = vld [vmem:[%s467 + $0xd8] sm:$0xff]
        %v487 = vld [vmem:[%s467 + $0xe0] sm:$0xff]
        %v488 = vld [vmem:[%s467 + $0xf0] sm:$0xff]
        %v489 = vld [vmem:[%s467 + $0xf8] sm:$0xff]
        %v490 = vld [vmem:[%s467 + $0x108] sm:$0xff]
        %v491 = vld [vmem:[%s467 + $0x110] sm:$0xff]
        %v492 = vld [vmem:[%s467 + $0x120] sm:$0xff]
        %v493 = vld [vmem:[%s467 + $0x128] sm:$0xff]
        %v494 = vld [vmem:[%s467 + $0x138] sm:$0xff]
        %v495 = vld [vmem:[%s467 + $0x140] sm:$0xff]
        %v496 = vld [vmem:[%s467 + $0x150] sm:$0xff]
        %v497 = vld [vmem:[%s467 + $0x158] sm:$0xff]
        %v498 = vld [vmem:[%s467 + $0x168] sm:$0xff]
        %v499 = vld [vmem:[%s467 + $0x170] sm:$0xff]
        %v500 = vld [vmem:[%s1 + $0x3] sm:$0x1]
        %v501 = vlaneseq
        %v502 = vshrl.u32 %v501, 7
        %v503 = vsub.s32 0, %v502
        %v504 = vrot.slane %v500, %v503
        %v505 = vmul.f32 %v468, %v504
        %v506 = vmul.f32 %v469, %v504
        %v507 = vmul.f32 %v470, %v504
        %v508 = vmul.f32 %v471, %v504
        %v509 = vmul.f32 %v472, %v504
        %v510 = vmul.f32 %v473, %v504
        %v511 = vmul.f32 %v474, %v504
        %v512 = vmul.f32 %v475, %v504
        %v513 = vmul.f32 %v476, %v504
        %v514 = vmul.f32 %v477, %v504
        %v515 = vmul.f32 %v478, %v504
        %v516 = vmul.f32 %v479, %v504
        %v517 = vmul.f32 %v480, %v504
        %v518 = vmul.f32 %v481, %v504
        %v519 = vmul.f32 %v482, %v504
        %v520 = vmul.f32 %v483, %v504
        %v521 = vmul.f32 %v484, %v504
        %v522 = vmul.f32 %v485, %v504
        %v523 = vmul.f32 %v486, %v504
        %v524 = vmul.f32 %v487, %v504
        %v525 = vmul.f32 %v488, %v504
        %v526 = vmul.f32 %v489, %v504
        %v527 = vmul.f32 %v490, %v504
        %v528 = vmul.f32 %v491, %v504
        %v529 = vmul.f32 %v492, %v504
        %v530 = vmul.f32 %v493, %v504
        %v531 = vmul.f32 %v494, %v504
        %v532 = vmul.f32 %v495, %v504
        %v533 = vmul.f32 %v496, %v504
        %v534 = vmul.f32 %v497, %v504
        %v535 = vmul.f32 %v498, %v504
        %v536 = vmul.f32 %v499, %v504
        %v537 = vadd.f32 %v435, %v505
        %v538 = vadd.f32 %v436, %v506
        %v539 = vadd.f32 %v437, %v507
        %v540 = vadd.f32 %v438, %v508
        %v541 = vadd.f32 %v439, %v509
        %v542 = vadd.f32 %v440, %v510
        %v543 = vadd.f32 %v441, %v511
        %v544 = vadd.f32 %v442, %v512
        %v545 = vadd.f32 %v443, %v513
        %v546 = vadd.f32 %v444, %v514
        %v547 = vadd.f32 %v445, %v515
        %v548 = vadd.f32 %v446, %v516
        %v549 = vadd.f32 %v447, %v517
        %v550 = vadd.f32 %v448, %v518
        %v551 = vadd.f32 %v449, %v519
        %v552 = vadd.f32 %v450, %v520
        %v553 = vadd.f32 %v451, %v521
        %v554 = vadd.f32 %v452, %v522
        %v555 = vadd.f32 %v453, %v523
        %v556 = vadd.f32 %v454, %v524
        %v557 = vadd.f32 %v455, %v525
        %v558 = vadd.f32 %v456, %v526
        %v559 = vadd.f32 %v457, %v527
        %v560 = vadd.f32 %v458, %v528
        %v561 = vadd.f32 %v459, %v529
        %v562 = vadd.f32 %v460, %v530
        %v563 = vadd.f32 %v461, %v531
        %v564 = vadd.f32 %v462, %v532
        %v565 = vadd.f32 %v463, %v533
        %v566 = vadd.f32 %v464, %v534
        %v567 = vadd.f32 %v465, %v535
        %v568 = vadd.f32 %v466, %v536
        %v569 = vld [vmem:[%s467 + $0x1] sm:$0xff]
        %v570 = vld [vmem:[%s467 + $0x9] sm:$0xff]
        %v571 = vld [vmem:[%s467 + $0x19] sm:$0xff]
        %v572 = vld [vmem:[%s467 + $0x21] sm:$0xff]
        %v573 = vld [vmem:[%s467 + $0x31] sm:$0xff]
        %v574 = vld [vmem:[%s467 + $0x39] sm:$0xff]
        %v575 = vld [vmem:[%s467 + $0x49] sm:$0xff]
        %v576 = vld [vmem:[%s467 + $0x51] sm:$0xff]
        %v577 = vld [vmem:[%s467 + $0x61] sm:$0xff]
        %v578 = vld [vmem:[%s467 + $0x69] sm:$0xff]
        %v579 = vld [vmem:[%s467 + $0x79] sm:$0xff]
        %v580 = vld [vmem:[%s467 + $0x81] sm:$0xff]
        %v581 = vld [vmem:[%s467 + $0x91] sm:$0xff]
        %v582 = vld [vmem:[%s467 + $0x99] sm:$0xff]
        %v583 = vld [vmem:[%s467 + $0xa9] sm:$0xff]
        %v584 = vld [vmem:[%s467 + $0xb1] sm:$0xff]
        %v585 = vld [vmem:[%s467 + $0xc1] sm:$0xff]
        %v586 = vld [vmem:[%s467 + $0xc9] sm:$0xff]
        %v587 = vld [vmem:[%s467 + $0xd9] sm:$0xff]
        %v588 = vld [vmem:[%s467 + $0xe1] sm:$0xff]
        %v589 = vld [vmem:[%s467 + $0xf1] sm:$0xff]
        %v590 = vld [vmem:[%s467 + $0xf9] sm:$0xff]
        %v591 = vld [vmem:[%s467 + $0x109] sm:$0xff]
        %v592 = vld [vmem:[%s467 + $0x111] sm:$0xff]
        %v593 = vld [vmem:[%s467 + $0x121] sm:$0xff]
        %v594 = vld [vmem:[%s467 + $0x129] sm:$0xff]
        %v595 = vld [vmem:[%s467 + $0x139] sm:$0xff]
        %v596 = vld [vmem:[%s467 + $0x141] sm:$0xff]
        %v597 = vld [vmem:[%s467 + $0x151] sm:$0xff]
        %v598 = vld [vmem:[%s467 + $0x159] sm:$0xff]
        %v599 = vld [vmem:[%s467 + $0x169] sm:$0xff]
        %v600 = vld [vmem:[%s467 + $0x171] sm:$0xff]
        %v601 = vld [vmem:[%s1 + $0x4] sm:$0x1]
        %v602 = vlaneseq
        %v603 = vshrl.u32 %v602, 7
        %v604 = vsub.s32 0, %v603
        %v605 = vrot.slane %v601, %v604
        %v606 = vmul.f32 %v569, %v605
        %v607 = vmul.f32 %v570, %v605
        %v608 = vmul.f32 %v571, %v605
        %v609 = vmul.f32 %v572, %v605
        %v610 = vmul.f32 %v573, %v605
        %v611 = vmul.f32 %v574, %v605
        %v612 = vmul.f32 %v575, %v605
        %v613 = vmul.f32 %v576, %v605
        %v614 = vmul.f32 %v577, %v605
        %v615 = vmul.f32 %v578, %v605
        %v616 = vmul.f32 %v579, %v605
        %v617 = vmul.f32 %v580, %v605
        %v618 = vmul.f32 %v581, %v605
        %v619 = vmul.f32 %v582, %v605
        %v620 = vmul.f32 %v583, %v605
        %v621 = vmul.f32 %v584, %v605
        %v622 = vmul.f32 %v585, %v605
        %v623 = vmul.f32 %v586, %v605
        %v624 = vmul.f32 %v587, %v605
        %v625 = vmul.f32 %v588, %v605
        %v626 = vmul.f32 %v589, %v605
        %v627 = vmul.f32 %v590, %v605
        %v628 = vmul.f32 %v591, %v605
        %v629 = vmul.f32 %v592, %v605
        %v630 = vmul.f32 %v593, %v605
        %v631 = vmul.f32 %v594, %v605
        %v632 = vmul.f32 %v595, %v605
        %v633 = vmul.f32 %v596, %v605
        %v634 = vmul.f32 %v597, %v605
        %v635 = vmul.f32 %v598, %v605
        %v636 = vmul.f32 %v599, %v605
        %v637 = vmul.f32 %v600, %v605
        %v638 = vadd.f32 %v537, %v606
        %v639 = vadd.f32 %v538, %v607
        %v640 = vadd.f32 %v539, %v608
        %v641 = vadd.f32 %v540, %v609
        %v642 = vadd.f32 %v541, %v610
        %v643 = vadd.f32 %v542, %v611
        %v644 = vadd.f32 %v543, %v612
        %v645 = vadd.f32 %v544, %v613
        %v646 = vadd.f32 %v545, %v614
        %v647 = vadd.f32 %v546, %v615
        %v648 = vadd.f32 %v547, %v616
        %v649 = vadd.f32 %v548, %v617
        %v650 = vadd.f32 %v549, %v618
        %v651 = vadd.f32 %v550, %v619
        %v652 = vadd.f32 %v551, %v620
        %v653 = vadd.f32 %v552, %v621
        %v654 = vadd.f32 %v553, %v622
        %v655 = vadd.f32 %v554, %v623
        %v656 = vadd.f32 %v555, %v624
        %v657 = vadd.f32 %v556, %v625
        %v658 = vadd.f32 %v557, %v626
        %v659 = vadd.f32 %v558, %v627
        %v660 = vadd.f32 %v559, %v628
        %v661 = vadd.f32 %v560, %v629
        %v662 = vadd.f32 %v561, %v630
        %v663 = vadd.f32 %v562, %v631
        %v664 = vadd.f32 %v563, %v632
        %v665 = vadd.f32 %v564, %v633
        %v666 = vadd.f32 %v565, %v634
        %v667 = vadd.f32 %v566, %v635
        %v668 = vadd.f32 %v567, %v636
        %v669 = vadd.f32 %v568, %v637
        %v670 = vld [vmem:[%s467 + $0x2] sm:$0xff]
        %v671 = vld [vmem:[%s467 + $0xa] sm:$0xff]
        %v672 = vld [vmem:[%s467 + $0x1a] sm:$0xff]
        %v673 = vld [vmem:[%s467 + $0x22] sm:$0xff]
        %v674 = vld [vmem:[%s467 + $0x32] sm:$0xff]
        %v675 = vld [vmem:[%s467 + $0x3a] sm:$0xff]
        %v676 = vld [vmem:[%s467 + $0x4a] sm:$0xff]
        %v677 = vld [vmem:[%s467 + $0x52] sm:$0xff]
        %v678 = vld [vmem:[%s467 + $0x62] sm:$0xff]
        %v679 = vld [vmem:[%s467 + $0x6a] sm:$0xff]
        %v680 = vld [vmem:[%s467 + $0x7a] sm:$0xff]
        %v681 = vld [vmem:[%s467 + $0x82] sm:$0xff]
        %v682 = vld [vmem:[%s467 + $0x92] sm:$0xff]
        %v683 = vld [vmem:[%s467 + $0x9a] sm:$0xff]
        %v684 = vld [vmem:[%s467 + $0xaa] sm:$0xff]
        %v685 = vld [vmem:[%s467 + $0xb2] sm:$0xff]
        %v686 = vld [vmem:[%s467 + $0xc2] sm:$0xff]
        %v687 = vld [vmem:[%s467 + $0xca] sm:$0xff]
        %v688 = vld [vmem:[%s467 + $0xda] sm:$0xff]
        %v689 = vld [vmem:[%s467 + $0xe2] sm:$0xff]
        %v690 = vld [vmem:[%s467 + $0xf2] sm:$0xff]
        %v691 = vld [vmem:[%s467 + $0xfa] sm:$0xff]
        %v692 = vld [vmem:[%s467 + $0x10a] sm:$0xff]
        %v693 = vld [vmem:[%s467 + $0x112] sm:$0xff]
        %v694 = vld [vmem:[%s467 + $0x122] sm:$0xff]
        %v695 = vld [vmem:[%s467 + $0x12a] sm:$0xff]
        %v696 = vld [vmem:[%s467 + $0x13a] sm:$0xff]
        %v697 = vld [vmem:[%s467 + $0x142] sm:$0xff]
        %v698 = vld [vmem:[%s467 + $0x152] sm:$0xff]
        %v699 = vld [vmem:[%s467 + $0x15a] sm:$0xff]
        %v700 = vld [vmem:[%s467 + $0x16a] sm:$0xff]
        %v701 = vld [vmem:[%s467 + $0x172] sm:$0xff]
        %v702 = vld [vmem:[%s1 + $0x5] sm:$0x1]
        %v703 = vlaneseq
        %v704 = vshrl.u32 %v703, 7
        %v705 = vsub.s32 0, %v704
        %v706 = vrot.slane %v702, %v705
        %v707 = vmul.f32 %v670, %v706
        %v708 = vmul.f32 %v671, %v706
        %v709 = vmul.f32 %v672, %v706
        %v710 = vmul.f32 %v673, %v706
        %v711 = vmul.f32 %v674, %v706
        %v712 = vmul.f32 %v675, %v706
        %v713 = vmul.f32 %v676, %v706
        %v714 = vmul.f32 %v677, %v706
        %v715 = vmul.f32 %v678, %v706
        %v716 = vmul.f32 %v679, %v706
        %v717 = vmul.f32 %v680, %v706
        %v718 = vmul.f32 %v681, %v706
        %v719 = vmul.f32 %v682, %v706
        %v720 = vmul.f32 %v683, %v706
        %v721 = vmul.f32 %v684, %v706
        %v722 = vmul.f32 %v685, %v706
        %v723 = vmul.f32 %v686, %v706
        %v724 = vmul.f32 %v687, %v706
        %v725 = vmul.f32 %v688, %v706
        %v726 = vmul.f32 %v689, %v706
        %v727 = vmul.f32 %v690, %v706
        %v728 = vmul.f32 %v691, %v706
        %v729 = vmul.f32 %v692, %v706
        %v730 = vmul.f32 %v693, %v706
        %v731 = vmul.f32 %v694, %v706
        %v732 = vmul.f32 %v695, %v706
        %v733 = vmul.f32 %v696, %v706
        %v734 = vmul.f32 %v697, %v706
        %v735 = vmul.f32 %v698, %v706
        %v736 = vmul.f32 %v699, %v706
        %v737 = vmul.f32 %v700, %v706
        %v738 = vmul.f32 %v701, %v706
        %v739 = vadd.f32 %v638, %v707
        %v740 = vadd.f32 %v639, %v708
        %v741 = vadd.f32 %v640, %v709
        %v742 = vadd.f32 %v641, %v710
        %v743 = vadd.f32 %v642, %v711
        %v744 = vadd.f32 %v643, %v712
        %v745 = vadd.f32 %v644, %v713
        %v746 = vadd.f32 %v645, %v714
        %v747 = vadd.f32 %v646, %v715
        %v748 = vadd.f32 %v647, %v716
        %v749 = vadd.f32 %v648, %v717
        %v750 = vadd.f32 %v649, %v718
        %v751 = vadd.f32 %v650, %v719
        %v752 = vadd.f32 %v651, %v720
        %v753 = vadd.f32 %v652, %v721
        %v754 = vadd.f32 %v653, %v722
        %v755 = vadd.f32 %v654, %v723
        %v756 = vadd.f32 %v655, %v724
        %v757 = vadd.f32 %v656, %v725
        %v758 = vadd.f32 %v657, %v726
        %v759 = vadd.f32 %v658, %v727
        %v760 = vadd.f32 %v659, %v728
        %v761 = vadd.f32 %v660, %v729
        %v762 = vadd.f32 %v661, %v730
        %v763 = vadd.f32 %v662, %v731
        %v764 = vadd.f32 %v663, %v732
        %v765 = vadd.f32 %v664, %v733
        %v766 = vadd.f32 %v665, %v734
        %v767 = vadd.f32 %v666, %v735
        %v768 = vadd.f32 %v667, %v736
        %v769 = vadd.f32 %v668, %v737
        %v770 = vadd.f32 %v669, %v738
        %s771 = scalar_lea.vmem %s195, 48
        %v772 = vld [vmem:[%s771] sm:$0xff]
        %v773 = vld [vmem:[%s771 + $0x8] sm:$0xff]
        %v774 = vld [vmem:[%s771 + $0x18] sm:$0xff]
        %v775 = vld [vmem:[%s771 + $0x20] sm:$0xff]
        %v776 = vld [vmem:[%s771 + $0x30] sm:$0xff]
        %v777 = vld [vmem:[%s771 + $0x38] sm:$0xff]
        %v778 = vld [vmem:[%s771 + $0x48] sm:$0xff]
        %v779 = vld [vmem:[%s771 + $0x50] sm:$0xff]
        %v780 = vld [vmem:[%s771 + $0x60] sm:$0xff]
        %v781 = vld [vmem:[%s771 + $0x68] sm:$0xff]
        %v782 = vld [vmem:[%s771 + $0x78] sm:$0xff]
        %v783 = vld [vmem:[%s771 + $0x80] sm:$0xff]
        %v784 = vld [vmem:[%s771 + $0x90] sm:$0xff]
        %v785 = vld [vmem:[%s771 + $0x98] sm:$0xff]
        %v786 = vld [vmem:[%s771 + $0xa8] sm:$0xff]
        %v787 = vld [vmem:[%s771 + $0xb0] sm:$0xff]
        %v788 = vld [vmem:[%s771 + $0xc0] sm:$0xff]
        %v789 = vld [vmem:[%s771 + $0xc8] sm:$0xff]
        %v790 = vld [vmem:[%s771 + $0xd8] sm:$0xff]
        %v791 = vld [vmem:[%s771 + $0xe0] sm:$0xff]
        %v792 = vld [vmem:[%s771 + $0xf0] sm:$0xff]
        %v793 = vld [vmem:[%s771 + $0xf8] sm:$0xff]
        %v794 = vld [vmem:[%s771 + $0x108] sm:$0xff]
        %v795 = vld [vmem:[%s771 + $0x110] sm:$0xff]
        %v796 = vld [vmem:[%s771 + $0x120] sm:$0xff]
        %v797 = vld [vmem:[%s771 + $0x128] sm:$0xff]
        %v798 = vld [vmem:[%s771 + $0x138] sm:$0xff]
        %v799 = vld [vmem:[%s771 + $0x140] sm:$0xff]
        %v800 = vld [vmem:[%s771 + $0x150] sm:$0xff]
        %v801 = vld [vmem:[%s771 + $0x158] sm:$0xff]
        %v802 = vld [vmem:[%s771 + $0x168] sm:$0xff]
        %v803 = vld [vmem:[%s771 + $0x170] sm:$0xff]
        %v804 = vld [vmem:[%s1 + $0x6] sm:$0x1]
        %v805 = vlaneseq
        %v806 = vshrl.u32 %v805, 7
        %v807 = vsub.s32 0, %v806
        %v808 = vrot.slane %v804, %v807
        %v809 = vmul.f32 %v772, %v808
        %v810 = vmul.f32 %v773, %v808
        %v811 = vmul.f32 %v774, %v808
        %v812 = vmul.f32 %v775, %v808
        %v813 = vmul.f32 %v776, %v808
        %v814 = vmul.f32 %v777, %v808
        %v815 = vmul.f32 %v778, %v808
        %v816 = vmul.f32 %v779, %v808
        %v817 = vmul.f32 %v780, %v808
        %v818 = vmul.f32 %v781, %v808
        %v819 = vmul.f32 %v782, %v808
        %v820 = vmul.f32 %v783, %v808
        %v821 = vmul.f32 %v784, %v808
        %v822 = vmul.f32 %v785, %v808
        %v823 = vmul.f32 %v786, %v808
        %v824 = vmul.f32 %v787, %v808
        %v825 = vmul.f32 %v788, %v808
        %v826 = vmul.f32 %v789, %v808
        %v827 = vmul.f32 %v790, %v808
        %v828 = vmul.f32 %v791, %v808
        %v829 = vmul.f32 %v792, %v808
        %v830 = vmul.f32 %v793, %v808
        %v831 = vmul.f32 %v794, %v808
        %v832 = vmul.f32 %v795, %v808
        %v833 = vmul.f32 %v796, %v808
        %v834 = vmul.f32 %v797, %v808
        %v835 = vmul.f32 %v798, %v808
        %v836 = vmul.f32 %v799, %v808
        %v837 = vmul.f32 %v800, %v808
        %v838 = vmul.f32 %v801, %v808
        %v839 = vmul.f32 %v802, %v808
        %v840 = vmul.f32 %v803, %v808
        %v841 = vadd.f32 %v739, %v809
        %v842 = vadd.f32 %v740, %v810
        %v843 = vadd.f32 %v741, %v811
        %v844 = vadd.f32 %v742, %v812
        %v845 = vadd.f32 %v743, %v813
        %v846 = vadd.f32 %v744, %v814
        %v847 = vadd.f32 %v745, %v815
        %v848 = vadd.f32 %v746, %v816
        %v849 = vadd.f32 %v747, %v817
        %v850 = vadd.f32 %v748, %v818
        %v851 = vadd.f32 %v749, %v819
        %v852 = vadd.f32 %v750, %v820
        %v853 = vadd.f32 %v751, %v821
        %v854 = vadd.f32 %v752, %v822
        %v855 = vadd.f32 %v753, %v823
        %v856 = vadd.f32 %v754, %v824
        %v857 = vadd.f32 %v755, %v825
        %v858 = vadd.f32 %v756, %v826
        %v859 = vadd.f32 %v757, %v827
        %v860 = vadd.f32 %v758, %v828
        %v861 = vadd.f32 %v759, %v829
        %v862 = vadd.f32 %v760, %v830
        %v863 = vadd.f32 %v761, %v831
        %v864 = vadd.f32 %v762, %v832
        %v865 = vadd.f32 %v763, %v833
        %v866 = vadd.f32 %v764, %v834
        %v867 = vadd.f32 %v765, %v835
        %v868 = vadd.f32 %v766, %v836
        %v869 = vadd.f32 %v767, %v837
        %v870 = vadd.f32 %v768, %v838
        %v871 = vadd.f32 %v769, %v839
        %v872 = vadd.f32 %v770, %v840
        %v873 = vld [vmem:[%s771 + $0x1] sm:$0xff]
        %v874 = vld [vmem:[%s771 + $0x9] sm:$0xff]
        %v875 = vld [vmem:[%s771 + $0x19] sm:$0xff]
        %v876 = vld [vmem:[%s771 + $0x21] sm:$0xff]
        %v877 = vld [vmem:[%s771 + $0x31] sm:$0xff]
        %v878 = vld [vmem:[%s771 + $0x39] sm:$0xff]
        %v879 = vld [vmem:[%s771 + $0x49] sm:$0xff]
        %v880 = vld [vmem:[%s771 + $0x51] sm:$0xff]
        %v881 = vld [vmem:[%s771 + $0x61] sm:$0xff]
        %v882 = vld [vmem:[%s771 + $0x69] sm:$0xff]
        %v883 = vld [vmem:[%s771 + $0x79] sm:$0xff]
        %v884 = vld [vmem:[%s771 + $0x81] sm:$0xff]
        %v885 = vld [vmem:[%s771 + $0x91] sm:$0xff]
        %v886 = vld [vmem:[%s771 + $0x99] sm:$0xff]
        %v887 = vld [vmem:[%s771 + $0xa9] sm:$0xff]
        %v888 = vld [vmem:[%s771 + $0xb1] sm:$0xff]
        %v889 = vld [vmem:[%s771 + $0xc1] sm:$0xff]
        %v890 = vld [vmem:[%s771 + $0xc9] sm:$0xff]
        %v891 = vld [vmem:[%s771 + $0xd9] sm:$0xff]
        %v892 = vld [vmem:[%s771 + $0xe1] sm:$0xff]
        %v893 = vld [vmem:[%s771 + $0xf1] sm:$0xff]
        %v894 = vld [vmem:[%s771 + $0xf9] sm:$0xff]
        %v895 = vld [vmem:[%s771 + $0x109] sm:$0xff]
        %v896 = vld [vmem:[%s771 + $0x111] sm:$0xff]
        %v897 = vld [vmem:[%s771 + $0x121] sm:$0xff]
        %v898 = vld [vmem:[%s771 + $0x129] sm:$0xff]
        %v899 = vld [vmem:[%s771 + $0x139] sm:$0xff]
        %v900 = vld [vmem:[%s771 + $0x141] sm:$0xff]
        %v901 = vld [vmem:[%s771 + $0x151] sm:$0xff]
        %v902 = vld [vmem:[%s771 + $0x159] sm:$0xff]
        %v903 = vld [vmem:[%s771 + $0x169] sm:$0xff]
        %v904 = vld [vmem:[%s771 + $0x171] sm:$0xff]
        %v905 = vld [vmem:[%s1 + $0x7] sm:$0x1]
        %v906 = vlaneseq
        %v907 = vshrl.u32 %v906, 7
        %v908 = vsub.s32 0, %v907
        %v909 = vrot.slane %v905, %v908
        %v910 = vmul.f32 %v873, %v909
        %v911 = vmul.f32 %v874, %v909
        %v912 = vmul.f32 %v875, %v909
        %v913 = vmul.f32 %v876, %v909
        %v914 = vmul.f32 %v877, %v909
        %v915 = vmul.f32 %v878, %v909
        %v916 = vmul.f32 %v879, %v909
        %v917 = vmul.f32 %v880, %v909
        %v918 = vmul.f32 %v881, %v909
        %v919 = vmul.f32 %v882, %v909
        %v920 = vmul.f32 %v883, %v909
        %v921 = vmul.f32 %v884, %v909
        %v922 = vmul.f32 %v885, %v909
        %v923 = vmul.f32 %v886, %v909
        %v924 = vmul.f32 %v887, %v909
        %v925 = vmul.f32 %v888, %v909
        %v926 = vmul.f32 %v889, %v909
        %v927 = vmul.f32 %v890, %v909
        %v928 = vmul.f32 %v891, %v909
        %v929 = vmul.f32 %v892, %v909
        %v930 = vmul.f32 %v893, %v909
        %v931 = vmul.f32 %v894, %v909
        %v932 = vmul.f32 %v895, %v909
        %v933 = vmul.f32 %v896, %v909
        %v934 = vmul.f32 %v897, %v909
        %v935 = vmul.f32 %v898, %v909
        %v936 = vmul.f32 %v899, %v909
        %v937 = vmul.f32 %v900, %v909
        %v938 = vmul.f32 %v901, %v909
        %v939 = vmul.f32 %v902, %v909
        %v940 = vmul.f32 %v903, %v909
        %v941 = vmul.f32 %v904, %v909
        %v942 = vadd.f32 %v841, %v910
        %v943 = vadd.f32 %v842, %v911
        %v944 = vadd.f32 %v843, %v912
        %v945 = vadd.f32 %v844, %v913
        %v946 = vadd.f32 %v845, %v914
        %v947 = vadd.f32 %v846, %v915
        %v948 = vadd.f32 %v847, %v916
        %v949 = vadd.f32 %v848, %v917
        %v950 = vadd.f32 %v849, %v918
        %v951 = vadd.f32 %v850, %v919
        %v952 = vadd.f32 %v851, %v920
        %v953 = vadd.f32 %v852, %v921
        %v954 = vadd.f32 %v853, %v922
        %v955 = vadd.f32 %v854, %v923
        %v956 = vadd.f32 %v855, %v924
        %v957 = vadd.f32 %v856, %v925
        %v958 = vadd.f32 %v857, %v926
        %v959 = vadd.f32 %v858, %v927
        %v960 = vadd.f32 %v859, %v928
        %v961 = vadd.f32 %v860, %v929
        %v962 = vadd.f32 %v861, %v930
        %v963 = vadd.f32 %v862, %v931
        %v964 = vadd.f32 %v863, %v932
        %v965 = vadd.f32 %v864, %v933
        %v966 = vadd.f32 %v865, %v934
        %v967 = vadd.f32 %v866, %v935
        %v968 = vadd.f32 %v867, %v936
        %v969 = vadd.f32 %v868, %v937
        %v970 = vadd.f32 %v869, %v938
        %v971 = vadd.f32 %v870, %v939
        %v972 = vadd.f32 %v871, %v940
        %v973 = vadd.f32 %v872, %v941
        %v974 = vld [vmem:[%s771 + $0x2] sm:$0xff]
        %v975 = vld [vmem:[%s771 + $0xa] sm:$0xff]
        %v976 = vld [vmem:[%s771 + $0x1a] sm:$0xff]
        %v977 = vld [vmem:[%s771 + $0x22] sm:$0xff]
        %v978 = vld [vmem:[%s771 + $0x32] sm:$0xff]
        %v979 = vld [vmem:[%s771 + $0x3a] sm:$0xff]
        %v980 = vld [vmem:[%s771 + $0x4a] sm:$0xff]
        %v981 = vld [vmem:[%s771 + $0x52] sm:$0xff]
        %v982 = vld [vmem:[%s771 + $0x62] sm:$0xff]
        %v983 = vld [vmem:[%s771 + $0x6a] sm:$0xff]
        %v984 = vld [vmem:[%s771 + $0x7a] sm:$0xff]
        %v985 = vld [vmem:[%s771 + $0x82] sm:$0xff]
        %v986 = vld [vmem:[%s771 + $0x92] sm:$0xff]
        %v987 = vld [vmem:[%s771 + $0x9a] sm:$0xff]
        %v988 = vld [vmem:[%s771 + $0xaa] sm:$0xff]
        %v989 = vld [vmem:[%s771 + $0xb2] sm:$0xff]
        %v990 = vld [vmem:[%s771 + $0xc2] sm:$0xff]
        %v991 = vld [vmem:[%s771 + $0xca] sm:$0xff]
        %v992 = vld [vmem:[%s771 + $0xda] sm:$0xff]
        %v993 = vld [vmem:[%s771 + $0xe2] sm:$0xff]
        %v994 = vld [vmem:[%s771 + $0xf2] sm:$0xff]
        %v995 = vld [vmem:[%s771 + $0xfa] sm:$0xff]
        %v996 = vld [vmem:[%s771 + $0x10a] sm:$0xff]
        %v997 = vld [vmem:[%s771 + $0x112] sm:$0xff]
        %v998 = vld [vmem:[%s771 + $0x122] sm:$0xff]
        %v999 = vld [vmem:[%s771 + $0x12a] sm:$0xff]
        %v1000 = vld [vmem:[%s771 + $0x13a] sm:$0xff]
        %v1001 = vld [vmem:[%s771 + $0x142] sm:$0xff]
        %v1002 = vld [vmem:[%s771 + $0x152] sm:$0xff]
        %v1003 = vld [vmem:[%s771 + $0x15a] sm:$0xff]
        %v1004 = vld [vmem:[%s771 + $0x16a] sm:$0xff]
        %v1005 = vld [vmem:[%s771 + $0x172] sm:$0xff]
        %v1006 = vld [vmem:[%s1 + $0x8] sm:$0x1]
        %v1007 = vlaneseq
        %v1008 = vshrl.u32 %v1007, 7
        %v1009 = vsub.s32 0, %v1008
        %v1010 = vrot.slane %v1006, %v1009
        %v1011 = vmul.f32 %v974, %v1010
        %v1012 = vmul.f32 %v975, %v1010
        %v1013 = vmul.f32 %v976, %v1010
        %v1014 = vmul.f32 %v977, %v1010
        %v1015 = vmul.f32 %v978, %v1010
        %v1016 = vmul.f32 %v979, %v1010
        %v1017 = vmul.f32 %v980, %v1010
        %v1018 = vmul.f32 %v981, %v1010
        %v1019 = vmul.f32 %v982, %v1010
        %v1020 = vmul.f32 %v983, %v1010
        %v1021 = vmul.f32 %v984, %v1010
        %v1022 = vmul.f32 %v985, %v1010
        %v1023 = vmul.f32 %v986, %v1010
        %v1024 = vmul.f32 %v987, %v1010
        %v1025 = vmul.f32 %v988, %v1010
        %v1026 = vmul.f32 %v989, %v1010
        %v1027 = vmul.f32 %v990, %v1010
        %v1028 = vmul.f32 %v991, %v1010
        %v1029 = vmul.f32 %v992, %v1010
        %v1030 = vmul.f32 %v993, %v1010
        %v1031 = vmul.f32 %v994, %v1010
        %v1032 = vmul.f32 %v995, %v1010
        %v1033 = vmul.f32 %v996, %v1010
        %v1034 = vmul.f32 %v997, %v1010
        %v1035 = vmul.f32 %v998, %v1010
        %v1036 = vmul.f32 %v999, %v1010
        %v1037 = vmul.f32 %v1000, %v1010
        %v1038 = vmul.f32 %v1001, %v1010
        %v1039 = vmul.f32 %v1002, %v1010
        %v1040 = vmul.f32 %v1003, %v1010
        %v1041 = vmul.f32 %v1004, %v1010
        %v1042 = vmul.f32 %v1005, %v1010
        %v1043 = vadd.f32 %v942, %v1011
        %v1044 = vadd.f32 %v943, %v1012
        %v1045 = vadd.f32 %v944, %v1013
        %v1046 = vadd.f32 %v945, %v1014
        %v1047 = vadd.f32 %v946, %v1015
        %v1048 = vadd.f32 %v947, %v1016
        %v1049 = vadd.f32 %v948, %v1017
        %v1050 = vadd.f32 %v949, %v1018
        %v1051 = vadd.f32 %v950, %v1019
        %v1052 = vadd.f32 %v951, %v1020
        %v1053 = vadd.f32 %v952, %v1021
        %v1054 = vadd.f32 %v953, %v1022
        %v1055 = vadd.f32 %v954, %v1023
        %v1056 = vadd.f32 %v955, %v1024
        %v1057 = vadd.f32 %v956, %v1025
        %v1058 = vadd.f32 %v957, %v1026
        %v1059 = vadd.f32 %v958, %v1027
        %v1060 = vadd.f32 %v959, %v1028
        %v1061 = vadd.f32 %v960, %v1029
        %v1062 = vadd.f32 %v961, %v1030
        %v1063 = vadd.f32 %v962, %v1031
        %v1064 = vadd.f32 %v963, %v1032
        %v1065 = vadd.f32 %v964, %v1033
        %v1066 = vadd.f32 %v965, %v1034
        %v1067 = vadd.f32 %v966, %v1035
        %v1068 = vadd.f32 %v967, %v1036
        %v1069 = vadd.f32 %v968, %v1037
        %v1070 = vadd.f32 %v969, %v1038
        %v1071 = vadd.f32 %v970, %v1039
        %v1072 = vadd.f32 %v971, %v1040
        %v1073 = vadd.f32 %v972, %v1041
        %v1074 = vadd.f32 %v973, %v1042
        %v1075 = vld [vmem:[%s2] sm:$0xff]
        %v1076 = vld [vmem:[%s2 + $0x8] sm:$0xff]
        %v1077 = vld [vmem:[%s2 + $0x10] sm:$0xff]
        %v1078 = vld [vmem:[%s2 + $0x18] sm:$0xff]
        %v1079 = vld [vmem:[%s2 + $0x20] sm:$0xff]
        %v1080 = vld [vmem:[%s2 + $0x28] sm:$0xff]
        %v1081 = vld [vmem:[%s3] sm:$0x1]
        %v1083 = vlaneseq
        %v1084 = vshrl.u32 %v1083, 7
        %v1085 = vsub.s32 0, %v1084
        %v1086 = vrot.slane %v1081, %v1085
        %vm1088 = vcmask 392192
        %v1090 = vsel %vm1088, %v1043, 0
        %v1093 = vsel %vm1088, %v1044, 0
        %v1096 = vsel %vm1088, %v1045, 0
        %v1099 = vsel %vm1088, %v1046, 0
        %v1102 = vsel %vm1088, %v1047, 0
        %v1105 = vsel %vm1088, %v1048, 0
        %v1108 = vsel %vm1088, %v1049, 0
        %v1111 = vsel %vm1088, %v1050, 0
        %v1114 = vsel %vm1088, %v1051, 0
        %v1117 = vsel %vm1088, %v1052, 0
        %v1120 = vsel %vm1088, %v1053, 0
        %v1123 = vsel %vm1088, %v1054, 0
        %v1126 = vsel %vm1088, %v1055, 0
        %v1129 = vsel %vm1088, %v1056, 0
        %v1132 = vsel %vm1088, %v1057, 0
        %v1135 = vsel %vm1088, %v1058, 0
        %v1138 = vsel %vm1088, %v1059, 0
        %v1141 = vsel %vm1088, %v1060, 0
        %v1144 = vsel %vm1088, %v1061, 0
        %v1147 = vsel %vm1088, %v1062, 0
        %v1150 = vsel %vm1088, %v1063, 0
        %v1153 = vsel %vm1088, %v1064, 0
        %v1156 = vsel %vm1088, %v1065, 0
        %v1159 = vsel %vm1088, %v1066, 0
        %v1162 = vsel %vm1088, %v1067, 0
        %v1165 = vsel %vm1088, %v1068, 0
        %v1168 = vsel %vm1088, %v1069, 0
        %v1171 = vsel %vm1088, %v1070, 0
        %v1174 = vsel %vm1088, %v1071, 0
        %v1177 = vsel %vm1088, %v1072, 0
        %v1180 = vsel %vm1088, %v1073, 0
        %v1183 = vsel %vm1088, %v1074, 0
        %1185 = vmatprep.subr.mxu0 0.0
        %1186 = vmatpush1.msra.mxu0 %v1075
        %1187 = vmatprep.subr.mxu0 0.0
        %1188 = vmatpush1.msra.mxu0 %v1076
        %1189 = vmatprep.subr.mxu0 0.0
        %1190 = vmatpush1.msra.mxu0 %v1077
        %1191 = vmatprep.subr.mxu0 0.0
        %1192 = vmatpush1.msra.mxu0 %v1078
        %1193 = vmatprep.subr.mxu0 0.0
        %1194 = vmatpush1.msra.mxu0 %v1079
        %1195 = vmatprep.subr.mxu0 0.0
        %1196 = vmatpush1.msra.mxu0 %v1080
        %1197 = vmatprep.subr.mxu0 0.0
        %1198 = vmatpush1.msra.mxu0 0.0
        %1199 = vmatprep.subr.mxu0 0.0
        %1200 = vmatpush1.msra.mxu0 0.0
        %1201 = vmatprep.subr.mxu0 0.0
        %1202 = vmatpush1.msra.mxu0 0.0
        %1203 = vmatprep.subr.mxu0 0.0
        %1204 = vmatpush1.msra.mxu0 0.0
        %1205 = vmatprep.subr.mxu0 0.0
        %1206 = vmatpush1.msra.mxu0 0.0
        %1207 = vmatprep.subr.mxu0 0.0
        %1208 = vmatpush1.msra.mxu0 0.0
        %1209 = vmatprep.subr.mxu0 0.0
        %1210 = vmatpush1.msra.mxu0 0.0
        %1211 = vmatprep.subr.mxu0 0.0
        %1212 = vmatpush1.msra.mxu0 0.0
        %1213 = vmatprep.subr.mxu0 0.0
        %1214 = vmatpush1.msra.mxu0 0.0
        %1215 = vmatprep.subr.mxu0 0.0
        %1216 = vmatpush1.msra.mxu0 0.0
        %1217 = vmatprep.subr.mxu0 0.0
        %1218 = vmatpush1.msra.mxu0 0.0
        %1219 = vmatprep.subr.mxu0 0.0
        %1220 = vmatpush1.msra.mxu0 0.0
        %1221 = vmatprep.subr.mxu0 0.0
        %1222 = vmatpush1.msra.mxu0 0.0
        %1223 = vmatprep.subr.mxu0 0.0
        %1224 = vmatpush1.msra.mxu0 0.0
        %1225 = vmatprep.subr.mxu0 0.0
        %1226 = vmatpush1.msra.mxu0 0.0
        %1227 = vmatprep.subr.mxu0 0.0
        %1228 = vmatpush1.msra.mxu0 0.0
        %1229 = vmatprep.subr.mxu0 0.0
        %1230 = vmatpush1.msra.mxu0 0.0
        %1231 = vmatprep.subr.mxu0 0.0
        %1232 = vmatpush1.msra.mxu0 0.0
        %1233 = vmatprep.subr.mxu0 0.0
        %1234 = vmatpush1.msra.mxu0 0.0
        %1235 = vmatprep.subr.mxu0 0.0
        %1236 = vmatpush1.msra.mxu0 0.0
        %1237 = vmatprep.subr.mxu0 0.0
        %1238 = vmatpush1.msra.mxu0 0.0
        %1239 = vmatprep.subr.mxu0 0.0
        %1240 = vmatpush1.msra.mxu0 0.0
        %1241 = vmatprep.subr.mxu0 0.0
        %1242 = vmatpush1.msra.mxu0 0.0
        %1243 = vmatprep.subr.mxu0 0.0
        %1244 = vmatpush1.msra.mxu0 0.0
        %1245 = vmatprep.subr.mxu0 0.0
        %1246 = vmatpush1.msra.mxu0 0.0
        %1247 = vmatprep.subr.mxu0 0.0
        %1248 = vmatpush1.msra.mxu0 0.0
        %1249 = vmatprep.mubr.f32.mxu0 0.0
        %1250 = vmatmul.mubr.f32.gmra.mrb[0].mxu0 %v1090
        %v1251 = vpop.f32.mrb[0].mxu0
        %v1252 = vadd.f32 %v1086, %v1251
        %v1253 = vpop.f32.mrb[0].mxu0
        %1254 = vmatprep.mubr.f32.mxu0 0.0
        %1255 = vmatmul.mubr.f32.gmra.mrb[0].mxu0 %v1093
        %v1256 = vpop.f32.mrb[0].mxu0
        %v1257 = vadd.f32 %v1086, %v1256
        %v1258 = vpop.f32.mrb[0].mxu0
        %1259 = vmatprep.mubr.f32.mxu0 0.0
        %1260 = vmatmul.mubr.f32.gmra.mrb[0].mxu0 %v1096
        %v1261 = vpop.f32.mrb[0].mxu0
        %v1262 = vadd.f32 %v1086, %v1261
        %v1263 = vpop.f32.mrb[0].mxu0
        %1264 = vmatprep.mubr.f32.mxu0 0.0
        %1265 = vmatmul.mubr.f32.gmra.mrb[0].mxu0 %v1099
        %v1266 = vpop.f32.mrb[0].mxu0
        %v1267 = vadd.f32 %v1086, %v1266
        %v1268 = vpop.f32.mrb[0].mxu0
        %1269 = vmatprep.mubr.f32.mxu0 0.0
        %1270 = vmatmul.mubr.f32.gmra.mrb[0].mxu0 %v1102
        %v1271 = vpop.f32.mrb[0].mxu0
        %v1272 = vadd.f32 %v1086, %v1271
        %v1273 = vpop.f32.mrb[0].mxu0
        %1274 = vmatprep.mubr.f32.mxu0 0.0
        %1275 = vmatmul.mubr.f32.gmra.mrb[0].mxu0 %v1105
        %v1276 = vpop.f32.mrb[0].mxu0
        %v1277 = vadd.f32 %v1086, %v1276
        %v1278 = vpop.f32.mrb[0].mxu0
        %1279 = vmatprep.mubr.f32.mxu0 0.0
        %1280 = vmatmul.mubr.f32.gmra.mrb[0].mxu0 %v1108
        %v1281 = vpop.f32.mrb[0].mxu0
        %v1282 = vadd.f32 %v1086, %v1281
        %v1283 = vpop.f32.mrb[0].mxu0
        %1284 = vmatprep.mubr.f32.mxu0 0.0
        %1285 = vmatmul.mubr.f32.gmra.mrb[0].mxu0 %v1111
        %v1286 = vpop.f32.mrb[0].mxu0
        %v1287 = vadd.f32 %v1086, %v1286
        %v1288 = vpop.f32.mrb[0].mxu0
        %1289 = vmatprep.mubr.f32.mxu0 0.0
        %1290 = vmatmul.mubr.f32.gmra.mrb[0].mxu0 %v1114
        %v1291 = vpop.f32.mrb[0].mxu0
        %v1292 = vadd.f32 %v1086, %v1291
        %v1293 = vpop.f32.mrb[0].mxu0
        %1294 = vmatprep.mubr.f32.mxu0 0.0
        %1295 = vmatmul.mubr.f32.gmra.mrb[0].mxu0 %v1117
        %v1296 = vpop.f32.mrb[0].mxu0
        %v1297 = vadd.f32 %v1086, %v1296
        %v1298 = vpop.f32.mrb[0].mxu0
        %1299 = vmatprep.mubr.f32.mxu0 0.0
        %1300 = vmatmul.mubr.f32.gmra.mrb[0].mxu0 %v1120
        %v1301 = vpop.f32.mrb[0].mxu0
        %v1302 = vadd.f32 %v1086, %v1301
        %v1303 = vpop.f32.mrb[0].mxu0
        %1304 = vmatprep.mubr.f32.mxu0 0.0
        %1305 = vmatmul.mubr.f32.gmra.mrb[0].mxu0 %v1123
        %v1306 = vpop.f32.mrb[0].mxu0
        %v1307 = vadd.f32 %v1086, %v1306
        %v1308 = vpop.f32.mrb[0].mxu0
        %1309 = vmatprep.mubr.f32.mxu0 0.0
        %1310 = vmatmul.mubr.f32.gmra.mrb[0].mxu0 %v1126
        %v1311 = vpop.f32.mrb[0].mxu0
        %v1312 = vadd.f32 %v1086, %v1311
        %v1313 = vpop.f32.mrb[0].mxu0
        %1314 = vmatprep.mubr.f32.mxu0 0.0
        %1315 = vmatmul.mubr.f32.gmra.mrb[0].mxu0 %v1129
        %v1316 = vpop.f32.mrb[0].mxu0
        %v1317 = vadd.f32 %v1086, %v1316
        %v1318 = vpop.f32.mrb[0].mxu0
        %1319 = vmatprep.mubr.f32.mxu0 0.0
        %1320 = vmatmul.mubr.f32.gmra.mrb[0].mxu0 %v1132
        %v1321 = vpop.f32.mrb[0].mxu0
        %v1322 = vadd.f32 %v1086, %v1321
        %v1323 = vpop.f32.mrb[0].mxu0
        %1324 = vmatprep.mubr.f32.mxu0 0.0
        %1325 = vmatmul.mubr.f32.gmra.mrb[0].mxu0 %v1135
        %v1326 = vpop.f32.mrb[0].mxu0
        %v1327 = vadd.f32 %v1086, %v1326
        %v1328 = vpop.f32.mrb[0].mxu0
        %1329 = vmatprep.mubr.f32.mxu0 0.0
        %1330 = vmatmul.mubr.f32.gmra.mrb[0].mxu0 %v1138
        %v1331 = vpop.f32.mrb[0].mxu0
        %v1332 = vadd.f32 %v1086, %v1331
        %v1333 = vpop.f32.mrb[0].mxu0
        %1334 = vmatprep.mubr.f32.mxu0 0.0
        %1335 = vmatmul.mubr.f32.gmra.mrb[0].mxu0 %v1141
        %v1336 = vpop.f32.mrb[0].mxu0
        %v1337 = vadd.f32 %v1086, %v1336
        %v1338 = vpop.f32.mrb[0].mxu0
        %1339 = vmatprep.mubr.f32.mxu0 0.0
        %1340 = vmatmul.mubr.f32.gmra.mrb[0].mxu0 %v1144
        %v1341 = vpop.f32.mrb[0].mxu0
        %v1342 = vadd.f32 %v1086, %v1341
        %v1343 = vpop.f32.mrb[0].mxu0
        %1344 = vmatprep.mubr.f32.mxu0 0.0
        %1345 = vmatmul.mubr.f32.gmra.mrb[0].mxu0 %v1147
        %v1346 = vpop.f32.mrb[0].mxu0
        %v1347 = vadd.f32 %v1086, %v1346
        %v1348 = vpop.f32.mrb[0].mxu0
        %1349 = vmatprep.mubr.f32.mxu0 0.0
        %1350 = vmatmul.mubr.f32.gmra.mrb[0].mxu0 %v1150
        %v1351 = vpop.f32.mrb[0].mxu0
        %v1352 = vadd.f32 %v1086, %v1351
        %v1353 = vpop.f32.mrb[0].mxu0
        %1354 = vmatprep.mubr.f32.mxu0 0.0
        %1355 = vmatmul.mubr.f32.gmra.mrb[0].mxu0 %v1153
        %v1356 = vpop.f32.mrb[0].mxu0
        %v1357 = vadd.f32 %v1086, %v1356
        %v1358 = vpop.f32.mrb[0].mxu0
        %1359 = vmatprep.mubr.f32.mxu0 0.0
        %1360 = vmatmul.mubr.f32.gmra.mrb[0].mxu0 %v1156
        %v1361 = vpop.f32.mrb[0].mxu0
        %v1362 = vadd.f32 %v1086, %v1361
        %v1363 = vpop.f32.mrb[0].mxu0
        %1364 = vmatprep.mubr.f32.mxu0 0.0
        %1365 = vmatmul.mubr.f32.gmra.mrb[0].mxu0 %v1159
        %v1366 = vpop.f32.mrb[0].mxu0
        %v1367 = vadd.f32 %v1086, %v1366
        %v1368 = vpop.f32.mrb[0].mxu0
        %1369 = vmatprep.mubr.f32.mxu0 0.0
        %1370 = vmatmul.mubr.f32.gmra.mrb[0].mxu0 %v1162
        %v1371 = vpop.f32.mrb[0].mxu0
        %v1372 = vadd.f32 %v1086, %v1371
        %v1373 = vpop.f32.mrb[0].mxu0
        %1374 = vmatprep.mubr.f32.mxu0 0.0
        %1375 = vmatmul.mubr.f32.gmra.mrb[0].mxu0 %v1165
        %v1376 = vpop.f32.mrb[0].mxu0
        %v1377 = vadd.f32 %v1086, %v1376
        %v1378 = vpop.f32.mrb[0].mxu0
        %1379 = vmatprep.mubr.f32.mxu0 0.0
        %1380 = vmatmul.mubr.f32.gmra.mrb[0].mxu0 %v1168
        %v1381 = vpop.f32.mrb[0].mxu0
        %v1382 = vadd.f32 %v1086, %v1381
        %v1383 = vpop.f32.mrb[0].mxu0
        %1384 = vmatprep.mubr.f32.mxu0 0.0
        %1385 = vmatmul.mubr.f32.gmra.mrb[0].mxu0 %v1171
        %v1386 = vpop.f32.mrb[0].mxu0
        %v1387 = vadd.f32 %v1086, %v1386
        %v1388 = vpop.f32.mrb[0].mxu0
        %1389 = vmatprep.mubr.f32.mxu0 0.0
        %1390 = vmatmul.mubr.f32.gmra.mrb[0].mxu0 %v1174
        %v1391 = vpop.f32.mrb[0].mxu0
        %v1392 = vadd.f32 %v1086, %v1391
        %v1393 = vpop.f32.mrb[0].mxu0
        %1394 = vmatprep.mubr.f32.mxu0 0.0
        %1395 = vmatmul.mubr.f32.gmra.mrb[0].mxu0 %v1177
        %v1396 = vpop.f32.mrb[0].mxu0
        %v1397 = vadd.f32 %v1086, %v1396
        %v1398 = vpop.f32.mrb[0].mxu0
        %1399 = vmatprep.mubr.f32.mxu0 0.0
        %1400 = vmatmul.mubr.f32.gmra.mrb[0].mxu0 %v1180
        %v1401 = vpop.f32.mrb[0].mxu0
        %v1402 = vadd.f32 %v1086, %v1401
        %v1403 = vpop.f32.mrb[0].mxu0
        %1404 = vmatprep.mubr.f32.mxu0 0.0
        %1405 = vmatmul.mubr.f32.gmra.mrb[0].mxu0 %v1183
        %v1406 = vpop.f32.mrb[0].mxu0
        %v1407 = vadd.f32 %v1086, %v1406
        %v1408 = vpop.f32.mrb[0].mxu0
        %1409 = vdwg.mxu0
        %vm1410 = vcmask 523264
        %1411 = vst.msk [vmem:[%s190] sm:$0xff] %vm1410, %v1252
        %1412 = vst.msk [vmem:[%s190 + $0x8] sm:$0xff] %vm1410, %v1257
        %1413 = vst.msk [vmem:[%s190 + $0x10] sm:$0xff] %vm1410, %v1262
        %1414 = vst.msk [vmem:[%s190 + $0x18] sm:$0xff] %vm1410, %v1267
        %1415 = vst.msk [vmem:[%s190 + $0x20] sm:$0xff] %vm1410, %v1272
        %1416 = vst.msk [vmem:[%s190 + $0x28] sm:$0xff] %vm1410, %v1277
        %1417 = vst.msk [vmem:[%s190 + $0x30] sm:$0xff] %vm1410, %v1282
        %1418 = vst.msk [vmem:[%s190 + $0x38] sm:$0xff] %vm1410, %v1287
        %1419 = vst.msk [vmem:[%s190 + $0x40] sm:$0xff] %vm1410, %v1292
        %1420 = vst.msk [vmem:[%s190 + $0x48] sm:$0xff] %vm1410, %v1297
        %1421 = vst.msk [vmem:[%s190 + $0x50] sm:$0xff] %vm1410, %v1302
        %1422 = vst.msk [vmem:[%s190 + $0x58] sm:$0xff] %vm1410, %v1307
        %1423 = vst.msk [vmem:[%s190 + $0x60] sm:$0xff] %vm1410, %v1312
        %1424 = vst.msk [vmem:[%s190 + $0x68] sm:$0xff] %vm1410, %v1317
        %1425 = vst.msk [vmem:[%s190 + $0x70] sm:$0xff] %vm1410, %v1322
        %1426 = vst.msk [vmem:[%s190 + $0x78] sm:$0xff] %vm1410, %v1327
        %1427 = vst.msk [vmem:[%s190 + $0x80] sm:$0xff] %vm1410, %v1332
        %1428 = vst.msk [vmem:[%s190 + $0x88] sm:$0xff] %vm1410, %v1337
        %1429 = vst.msk [vmem:[%s190 + $0x90] sm:$0xff] %vm1410, %v1342
        %1430 = vst.msk [vmem:[%s190 + $0x98] sm:$0xff] %vm1410, %v1347
        %1431 = vst.msk [vmem:[%s190 + $0xa0] sm:$0xff] %vm1410, %v1352
        %1432 = vst.msk [vmem:[%s190 + $0xa8] sm:$0xff] %vm1410, %v1357
        %1433 = vst.msk [vmem:[%s190 + $0xb0] sm:$0xff] %vm1410, %v1362
        %1434 = vst.msk [vmem:[%s190 + $0xb8] sm:$0xff] %vm1410, %v1367
        %1435 = vst.msk [vmem:[%s190 + $0xc0] sm:$0xff] %vm1410, %v1372
        %1436 = vst.msk [vmem:[%s190 + $0xc8] sm:$0xff] %vm1410, %v1377
        %1437 = vst.msk [vmem:[%s190 + $0xd0] sm:$0xff] %vm1410, %v1382
        %1438 = vst.msk [vmem:[%s190 + $0xd8] sm:$0xff] %vm1410, %v1387
        %1439 = vst.msk [vmem:[%s190 + $0xe0] sm:$0xff] %vm1410, %v1392
        %1440 = vst.msk [vmem:[%s190 + $0xe8] sm:$0xff] %vm1410, %v1397
        %1441 = vst.msk [vmem:[%s190 + $0xf0] sm:$0xff] %vm1410, %v1402
        %1442 = vst.msk [vmem:[%s190 + $0xf8] sm:$0xff] %vm1410, %v1407
        %s1443 = sand.u32 %s115, 1
        %s1444 = scalar_lea.sflag [#allocation3], %s1443
        %s1445 = sand.u32 %s115, 1
        %s1446 = smul.addr %s1445, 256
        %s1447 = scalar_lea.vmem [#allocation2], %s1446
        // Predicated region
        $region37: #{cs_depthwise_conv2d.1} parent=35 // pred_check
          %p1448 = pneg %p125
        $region38: #{cs_depthwise_conv2d.1} parent=35 // pred_check_branch
          %1450 = sbr.rel (%p1448) target = $region40
        $region39: #{cs_depthwise_conv2d.1} parent=35 // pred_region
          %s1452 = ssub.s32 4096, 4096
          %1453 = vsyncadd %s1444, %s1452
          %s1454 = smul.addr %s18, 32
          %s1455 = smul.addr %s1454, 128
          %s1456 = scalar_lea.hbm %s4, %s1455
          %s1457 = sshll.u32 %s1447, 4
          %s1458 = int_to_ptr.vmem [resolvable:$true] %s1457
          %1463 = dma.vmem_to_hbm [thread:$0]  %s1458, 4096, %s1456, %s1444, 128, 128, 8
        $region40: #{cs_depthwise_conv2d.1} parent=35 // pred_fallthru
          _
      $region36: #{cs_depthwise_conv2d.1} parent=5 // pred_fallthru
        _
      %p1464 = scmp.le.s32.totalorder 2, %s13
      // Predicated region
      $region41: #{cs_depthwise_conv2d.1} parent=5 // pred_check
        %p1465 = pneg %p1464
      $region42: #{cs_depthwise_conv2d.1} parent=5 // pred_check_branch
        %1467 = sbr.rel (%p1465) target = $region44
      $region43: #{cs_depthwise_conv2d.1} parent=5 // pred_region
        %s1468 = ssub.s32 %s13, 2
        // Predicated region
        $region45: #{cs_depthwise_conv2d.1} parent=43 // pred_check
          %p1469 = pneg %p131
        $region46: #{cs_depthwise_conv2d.1} parent=43 // pred_check_branch
          %1471 = sbr.rel (%p1469) target = $region48
        $region47: #{cs_depthwise_conv2d.1} parent=43 // pred_region
          %s1472 = sand.u32 %s116, 1
          %s1473 = scalar_lea.sflag [#allocation3], %s1472
          %s1474 = sand.u32 %s116, 1
          %s1475 = smul.addr %s1474, 256
          %s1476 = scalar_lea.vmem [#allocation2], %s1475
          %1477 = dma.done %s1473, 4096
        $region48: #{cs_depthwise_conv2d.1} parent=43 // pred_fallthru
          _
      $region44: #{cs_depthwise_conv2d.1} parent=5 // pred_fallthru
        _
    $region6: #{cs_depthwise_conv2d.1} parent=1 // loop_footer
      %s17 = sadd.s32 1, %s13
    $region7: #{cs_depthwise_conv2d.1} parent=1 // loop_footer_branch
      %12 = sbr.rel target = $region3
    $region8: #{cs_depthwise_conv2d.1} parent=1 // loop_exit
      _
    %1478 = vsyncpa [#allocation3], 1
    %s1479 = scalar_lea.sflag [#allocation3], 1
    %1480 = vsyncpa %s1479, 1

</llo_original>
